<compile_context>
chip_gen: v5e
topology: v5e:2x2
jax: 0.10.0
libtpu: 0.0.40
codegen_flags: <defaults>
</compile_context>

<pallas_src>
import functools
import math

import numpy as np

import jax
import jax.numpy as jnp
from jax.experimental import pallas as pl
from jax.experimental.pallas import tpu as pltpu

# ----------------------------- small config ---------------------------------
BATCH = 2
SEQ = 8                  # sequence length (== text_ctx so padding_embedding broadcasts)
TEXT_CTX = SEQ
XF_WIDTH = 32            # hidden width (small stand-in for 512)
XF_LAYERS = 2            # small stand-in for 16
NUM_HEADS = 4            # head dim = 8
N_VOCAB = 14
MODEL_CHANNELS = 8       # transformer_proj: Linear(XF_WIDTH, MODEL_CHANNELS * 4)
WIN_SIZE = 4

assert SEQ % WIN_SIZE == 0 and SEQ > WIN_SIZE

# per-step (transformer, layer) weight slabs, streamed through VMEM
_PARAM_ORDER = ("ln1_w", "ln1_b", "qkv_w", "qkv_b", "ap_w", "ap_b",
                "ln2_w", "ln2_b", "fc_w", "fc_b", "fp_w", "fp_b")
_MATMUL_WEIGHTS = frozenset({"qkv_w", "ap_w", "fc_w", "fp_w"})
# transformer execution order: w1, sw1_edge, sw1_mid, w2, sw2_edge, sw2_mid, out
# bias/mask index per transformer: 0 = win, 1 = swin-edge, 2 = swin-mid
_T_BIAS = (0, 1, 2, 0, 1, 2, 0)


# --------------------------- fused Pallas kernel ------------------------------
def _nes_step_kernel(step_tbl_ref,                              # SMEM (used by index maps)
                     x_ref, bias_ref, mask_ref, sel_ref,
                     ln1_w_ref, ln1_b_ref, qkv_w_ref, qkv_b_ref,
                     ap_w_ref, ap_b_ref, ln2_w_ref, ln2_b_ref,
                     fc_w_ref, fc_b_ref, fp_w_ref, fp_b_ref,
                     proj_w_ref, proj_b_ref,
                     out_ref, x_vmem, *, num_heads):
    del step_tbl_ref                       # only consumed by the BlockSpec index_maps
    step = pl.program_id(1)
    last = pl.num_programs(1) - 1
    S, W = x_vmem.shape
    H = num_heads

    @pl.when(step == 0)
    def _():                               # new batch block: load residual stream
        x_vmem[...] = x_ref[0]

    def layer_norm(v, w, b):
        mu = jnp.mean(v, axis=-1, keepdims=True)
        var = jnp.mean(jnp.square(v - mu), axis=-1, keepdims=True)
        return (v - mu) * jax.lax.rsqrt(var + 1e-5) * w + b

    x = x_vmem[...]                        # [S, W] f32 residual stream
    bias = bias_ref[0]                     # [S, S] additive window mask for this step
    rmask = mask_ref[0]                    # [S, 1] rows this step's transformer updates

    # -------- attention: all heads batched on a leading dim (no slices/concats) ------
    h = layer_norm(x, ln1_w_ref[0], ln1_b_ref[0]).astype(jnp.bfloat16)
    h3 = jnp.broadcast_to(h[None], (3 * H, S, W))
    # qkv weights are host-permuted to [3H, W, D] ([Q|K|V] head-major), q/k scale folded in
    qkv = jnp.einsum('psw,pwd->psd', h3, qkv_w_ref[0],
                     preferred_element_type=jnp.float32) + qkv_b_ref[0]   # [3H, S, D]
    q = qkv[:H].astype(jnp.bfloat16)
    k = qkv[H:2 * H].astype(jnp.bfloat16)
    v = qkv[2 * H:].astype(jnp.bfloat16)
    logits = jnp.einsum('hqd,hkd->hqk', q, k,
                        preferred_element_type=jnp.float32) + bias[None]  # [H, S, S]
    logits = logits - jnp.max(logits, axis=-1, keepdims=True)
    p = jnp.exp(logits)
    p = p * pl.reciprocal(jnp.sum(p, axis=-1, keepdims=True), approx=True)
    ctx = jnp.einsum('hqk,hkd->hqd', p.astype(jnp.bfloat16), v,
                     preferred_element_type=jnp.float32)                  # [H, S, D]
    attn = jnp.sum(jnp.einsum('hqd,hdw->hqw', ctx.astype(jnp.bfloat16), ap_w_ref[0],
                              preferred_element_type=jnp.float32), axis=0)
    attn = attn + ap_b_ref[0]
    x = x + rmask * attn

    # ------------------------------------ MLP ----------------------------------------
    h2 = layer_norm(x, ln2_w_ref[0], ln2_b_ref[0]).astype(jnp.bfloat16)
    m = jnp.dot(h2, fc_w_ref[0], preferred_element_type=jnp.float32) + fc_b_ref[0]
    m = 0.5 * m * (1.0 + jax.lax.erf(m * (1.0 / math.sqrt(2.0))))   # exact erf-GELU
    m = jnp.dot(m.astype(jnp.bfloat16), fp_w_ref[0],
                preferred_element_type=jnp.float32) + fp_b_ref[0]
    x = x + rmask * m

    x_vmem[...] = x

    # -------- fused epilogue: last-token-per-window selection matmul + proj ----------
    @pl.when(step == last)
    def _():
        emb = jnp.dot(sel_ref[...], x, preferred_element_type=jnp.float32)   # [n_win, W]
        proj = jnp.dot(emb.astype(jnp.bfloat16), proj_w_ref[...],
                       preferred_element_type=jnp.float32) + proj_b_ref[...]
        out_ref[0] = jnp.concatenate([emb, proj], axis=-1).astype(out_ref.dtype)


# ----------------------------- pallas_call wrapper ----------------------------
def nes_fused_call(x, params):
    """x: [B, S, W] f32.  Returns [B, n_win, W + P] = (emb | proj)."""
    B, S, W = x.shape
    n_win = S // WIN_SIZE
    P = params["proj_w"].shape[-1]
    weights = [params["stacked"][k] for k in _PARAM_ORDER]
    n_steps = int(weights[0].shape[0])

    def _const_spec(arr):
        return pl.BlockSpec(tuple(arr.shape), lambda b, s, tbl, _n=arr.ndim: (0,) * _n)

    def _step_spec(arr):                                  # per-step streamed weight slab
        z = (0,) * (arr.ndim - 1)
        return pl.BlockSpec((1,) + tuple(arr.shape[1:]),
                            lambda b, s, tbl, _z=z: (s,) + _z)

    def _table_spec(arr):                                 # step -> bias/mask variant
        z = (0,) * (arr.ndim - 1)
        return pl.BlockSpec((1,) + tuple(arr.shape[1:]),
                            lambda b, s, tbl, _z=z: (tbl[s],) + _z)

    in_specs = (
        [pl.BlockSpec((1, S, W), lambda b, s, tbl: (b, 0, 0)),   # activations (per batch)
         _table_spec(params["bias"]),                            # window attention bias
         _table_spec(params["mask"]),                            # row-update mask
         _const_spec(params["sel"])]                             # last-token selector
        + [_step_spec(w) for w in weights]
        + [_const_spec(params["proj_w"]), _const_spec(params["proj_b"])]
    )
    out_spec = pl.BlockSpec((1, n_win, W + P), lambda b, s, tbl: (b, 0, 0))

    kernel = functools.partial(_nes_step_kernel, num_heads=NUM_HEADS)
    return pl.pallas_call(
        kernel,
        out_shape=jax.ShapeDtypeStruct((B, n_win, W + P), jnp.float32),
        grid_spec=pltpu.PrefetchScalarGridSpec(
            num_scalar_prefetch=1,
            grid=(B, n_steps),
            in_specs=in_specs,
            out_specs=out_spec,
            scratch_shapes=[pltpu.VMEM((S, W), jnp.float32)],
        ),
        compiler_params=pltpu.CompilerParams(
            dimension_semantics=("parallel", "arbitrary")),
    )(params["step_tbl"], x, params["bias"], params["mask"], params["sel"],
      *weights, params["proj_w"], params["proj_b"])


def nes_forward(params, tokens, mask):
    B, S = tokens.shape
    # token embedding + padding-embedding masking: plain-JAX glue (gather stays outside)
    xf_in = params["token_embedding"][tokens]                               # [B, S, W]
    xf_in = jnp.where(mask[..., None], xf_in, params["padding_embedding"][None])
    out = nes_fused_call(xf_in.astype(jnp.float32), params)                 # [B, n_win, W+P]
    emb, proj = out[..., :XF_WIDTH], out[..., XF_WIDTH:]
    n_win = S // WIN_SIZE
    return [dict(xf_proj=proj[:, i],                     # [B, model_channels*4]
                 xf_out=emb[:, i][:, :, None])           # [B, W, 1]
            for i in range(n_win)]


# ------------------------- host-side precomputation ---------------------------
def build_window_tables(S, win, layers):
    """Window biases (additive), row-update masks, last-token selector, step table."""
    half = win // 2
    win_id = np.arange(S) // win                         # non-shifted windows
    bounds = [0, half]                                   # shifted-window boundaries
    while bounds[-1] + win < S:
        bounds.append(bounds[-1] + win)
    bounds.append(S)
    swin_id = np.zeros(S, np.int64)
    for w in range(len(bounds) - 1):
        swin_id[bounds[w]:bounds[w + 1]] = w
    is_edge = (swin_id == 0) | (swin_id == len(bounds) - 2)

    eye = np.eye(S, dtype=bool)
    same_win = win_id[:, None] == win_id[None, :]
    same_swin = swin_id[:, None] == swin_id[None, :]
    to_bias = lambda ok: np.where(ok, 0.0, -1e30).astype(np.float32)

    bias = np.stack([                                                          # [3, S, S]
        to_bias(same_win),                                                     # 0: win
        to_bias((same_swin & is_edge[:, None] & is_edge[None, :]) | eye),      # 1: edge
        to_bias((same_swin & ~is_edge[:, None] & ~is_edge[None, :]) | eye),    # 2: mid
    ])
    mask = np.stack([                                                          # [3, S, 1]
        np.ones((S, 1), np.float32),
        is_edge.astype(np.float32)[:, None],
        (~is_edge).astype(np.float32)[:, None],
    ])
    n_win = S // win
    sel = np.zeros((n_win, S), np.float32)
    sel[np.arange(n_win), np.arange(n_win) * win + win - 1] = 1.0
    step_tbl = np.repeat(np.asarray(_T_BIAS, np.int32), layers)                # [7*L]
    return (jnp.asarray(bias), jnp.asarray(mask), jnp.asarray(sel),
            jnp.asarray(step_tbl))


def init_transformer_params(key, layers, width, heads):
    """One GLIDE Transformer's weights in the kernel layout: heads batched on a leading
    dim ([Q|K|V] head-major) and the 1/sqrt(sqrt(D)) q/k scale folded into QKV."""
    L, W, H = layers, width, heads
    D = W // H
    scale = D ** -0.25
    ks = jax.random.split(key, 4)
    nrm = lambda k, shp: jax.random.normal(k, shp, jnp.float32) * 0.02

    # GLIDE c_qkv: Linear(W, 3W); columns interleaved per head as [q|k|v].
    qkv_w = nrm(ks[0], (L, W, 3 * W))
    qkv_b = jnp.zeros((L, 3 * W), jnp.float32)
    qkv_w = qkv_w.reshape(L, W, H, 3, D).transpose(0, 3, 2, 1, 4).reshape(L, 3 * H, W, D)
    qkv_b = qkv_b.reshape(L, H, 3, D).transpose(0, 2, 1, 3).reshape(L, 3 * H, 1, D)
    part_scale = jnp.concatenate(
        [jnp.full((2 * H,), scale, jnp.float32), jnp.ones((H,), jnp.float32)])
    qkv_w = qkv_w * part_scale[None, :, None, None]
    qkv_b = qkv_b * part_scale[None, :, None, None]

    # GLIDE attention c_proj: Linear(W, W); rows head-major -> [L, H, D, W].
    ap_w = nrm(ks[1], (L, W, W)).reshape(L, H, D, W)

    return dict(
        ln1_w=jnp.ones((L, 1, W), jnp.float32), ln1_b=jnp.zeros((L, 1, W), jnp.float32),
        qkv_w=qkv_w, qkv_b=qkv_b,
        ap_w=ap_w, ap_b=jnp.zeros((L, 1, W), jnp.float32),
        ln2_w=jnp.ones((L, 1, W), jnp.float32), ln2_b=jnp.zeros((L, 1, W), jnp.float32),
        fc_w=nrm(ks[2], (L, W, 4 * W)), fc_b=jnp.zeros((L, 1, 4 * W), jnp.float32),
        fp_w=nrm(ks[3], (L, 4 * W, W)), fp_b=jnp.zeros((L, 1, W), jnp.float32),
    )


def init_nes_params(key):
    ks = jax.random.split(key, 10)
    W, L, H = XF_WIDTH, XF_LAYERS, NUM_HEADS
    # 7 distinct Transformers in execution order:
    # w_t1, sw_t1_edge, sw_t1_mid, w_t2, sw_t2_edge, sw_t2_mid, out_t
    tdicts = [init_transformer_params(ks[2 + i], L, W, H) for i in range(7)]
    stacked = {}
    for name in _PARAM_ORDER:
        arr = jnp.concatenate([d[name] for d in tdicts], axis=0)     # [7L, ...] per step
        if name in _MATMUL_WEIGHTS:
            arr = arr.astype(jnp.bfloat16)     # bf16 weights in HBM, f32 accumulation
        stacked[name] = arr
    bias, mask, sel, step_tbl = build_window_tables(SEQ, WIN_SIZE, L)
    return {
        "token_embedding": jax.random.normal(ks[0], (N_VOCAB, W), jnp.float32) * 0.02,
        "padding_embedding": jax.random.normal(ks[1], (TEXT_CTX, W), jnp.float32) * 0.02,
        "stacked": stacked,
        "proj_w": (jax.random.normal(ks[9], (W, MODEL_CHANNELS * 4), jnp.float32)
                   * 0.02).astype(jnp.bfloat16),
        "proj_b": jnp.zeros((1, MODEL_CHANNELS * 4), jnp.float32),
        "bias": bias, "mask": mask, "sel": sel, "step_tbl": step_tbl,
    }


# --------------------------------- main ---------------------------------------
if __name__ == "__main__":
    key = jax.random.PRNGKey(0)
    k_params, k_tok = jax.random.split(key)
    params = init_nes_params(k_params)

    tokens = jax.random.randint(k_tok, (BATCH, SEQ), 0, N_VOCAB, dtype=jnp.int32)
    # deterministic mask: batch 0 has last 2 positions padded, batch 1 fully valid
    mask = jnp.array([[1, 1, 1, 1, 1, 1, 0, 0],
                      [1, 1, 1, 1, 1, 1, 1, 1]], dtype=jnp.bool_)

    fwd = jax.jit(nes_forward)
    outputs = jax.block_until_ready(fwd(params, tokens, mask))

    # light sanity checks (NES returns one dict per window)
    assert len(outputs) == SEQ // WIN_SIZE
    assert outputs[0]["xf_proj"].shape == (BATCH, MODEL_CHANNELS * 4)
    assert outputs[0]["xf_out"].shape == (BATCH, XF_WIDTH, 1)
    assert all(bool(jnp.isfinite(o["xf_proj"]).all()) for o in outputs)
    assert all(bool(jnp.isfinite(o["xf_out"]).all()) for o in outputs)

    print("KERNEL_OK")
</pallas_src>

<mosaic_0001>
module attributes {stable_mosaic.version = 11 : i64} {
  func.func @_nes_step_kernel(%arg0: i32, %arg1: i32, %arg2: memref<14xi32, #tpu.memory_space<smem>>, %arg3: memref<1x8x32xf32, #tpu.memory_space<vmem>>, %arg4: memref<1x8x8xf32, #tpu.memory_space<vmem>>, %arg5: memref<1x8x1xf32, #tpu.memory_space<vmem>>, %arg6: memref<2x8xf32, #tpu.memory_space<vmem>>, %arg7: memref<1x1x32xf32, #tpu.memory_space<vmem>>, %arg8: memref<1x1x32xf32, #tpu.memory_space<vmem>>, %arg9: memref<1x12x32x8xbf16, #tpu.memory_space<vmem>>, %arg10: memref<1x12x1x8xf32, #tpu.memory_space<vmem>>, %arg11: memref<1x4x8x32xbf16, #tpu.memory_space<vmem>>, %arg12: memref<1x1x32xf32, #tpu.memory_space<vmem>>, %arg13: memref<1x1x32xf32, #tpu.memory_space<vmem>>, %arg14: memref<1x1x32xf32, #tpu.memory_space<vmem>>, %arg15: memref<1x32x128xbf16, #tpu.memory_space<vmem>>, %arg16: memref<1x1x128xf32, #tpu.memory_space<vmem>>, %arg17: memref<1x128x32xbf16, #tpu.memory_space<vmem>>, %arg18: memref<1x1x32xf32, #tpu.memory_space<vmem>>, %arg19: memref<32x32xbf16, #tpu.memory_space<vmem>>, %arg20: memref<1x32xf32, #tpu.memory_space<vmem>>, %arg21: memref<1x2x64xf32, #tpu.memory_space<vmem>>, %arg22: memref<8x32xf32, #tpu.memory_space<vmem>>) attributes {dimension_semantics = [#tpu.dimension_semantics<parallel>, #tpu.dimension_semantics<arbitrary>], iteration_bounds = array<i64: 2, 14>, scalar_prefetch = 1 : i64, scratch_operands = 1 : i64, tpu.core_type = #tpu.core_type<tc>, window_params = [{transform_indices = @transform_0, window_bounds = array<i64: 1, 8, 32>}, {transform_indices = @transform_1, window_bounds = array<i64: 1, 8, 8>}, {transform_indices = @transform_2, window_bounds = array<i64: 1, 8, 1>}, {pipeline_mode = #tpu.pipeline_mode<synchronous>, transform_indices = @transform_3, window_bounds = array<i64: 2, 8>}, {transform_indices = @transform_4, window_bounds = array<i64: 1, 1, 32>}, {transform_indices = @transform_5, window_bounds = array<i64: 1, 1, 32>}, {transform_indices = @transform_6, window_bounds = array<i64: 1, 12, 32, 8>}, {transform_indices = @transform_7, window_bounds = array<i64: 1, 12, 1, 8>}, {transform_indices = @transform_8, window_bounds = array<i64: 1, 4, 8, 32>}, {transform_indices = @transform_9, window_bounds = array<i64: 1, 1, 32>}, {transform_indices = @transform_10, window_bounds = array<i64: 1, 1, 32>}, {transform_indices = @transform_11, window_bounds = array<i64: 1, 1, 32>}, {transform_indices = @transform_12, window_bounds = array<i64: 1, 32, 128>}, {transform_indices = @transform_13, window_bounds = array<i64: 1, 1, 128>}, {transform_indices = @transform_14, window_bounds = array<i64: 1, 128, 32>}, {transform_indices = @transform_15, window_bounds = array<i64: 1, 1, 32>}, {pipeline_mode = #tpu.pipeline_mode<synchronous>, transform_indices = @transform_16, window_bounds = array<i64: 32, 32>}, {pipeline_mode = #tpu.pipeline_mode<synchronous>, transform_indices = @transform_17, window_bounds = array<i64: 1, 32>}, {transform_indices = @transform_18, window_bounds = array<i64: 1, 2, 64>}]} {
    %c0_i32 = arith.constant 0 : i32
    %0 = arith.cmpi eq, %arg1, %c0_i32 : i32
    %1 = arith.extui %0 : i1 to i32
    %c0_i32_0 = arith.constant 0 : i32
    %2 = arith.cmpi ne, %1, %c0_i32_0 : i32
    scf.if %2 {
      %c0_71 = arith.constant 0 : index
      %c0_72 = arith.constant 0 : index
      %c0_73 = arith.constant 0 : index
      %136 = vector.load %arg3[%c0_71, %c0_72, %c0_73] : memref<1x8x32xf32, #tpu.memory_space<vmem>>, vector<1x8x32xf32>
      %137 = vector.shape_cast %136 : vector<1x8x32xf32> to vector<8x32xf32>
      %c0_74 = arith.constant 0 : index
      %c0_75 = arith.constant 0 : index
      %138 = vector.load %arg22[%c0_74, %c0_75] : memref<8x32xf32, #tpu.memory_space<vmem>>, vector<8x32xf32>
      tpu.vector_store %arg22[%c0_74, %c0_75], %137 {strides = array<i32>} : memref<8x32xf32, #tpu.memory_space<vmem>>, vector<8x32xf32>,
    } else {
    }
    %c0 = arith.constant 0 : index
    %c0_1 = arith.constant 0 : index
    %3 = vector.load %arg22[%c0, %c0_1] : memref<8x32xf32, #tpu.memory_space<vmem>>, vector<8x32xf32>
    %c0_2 = arith.constant 0 : index
    %c0_3 = arith.constant 0 : index
    %c0_4 = arith.constant 0 : index
    %4 = vector.load %arg4[%c0_2, %c0_3, %c0_4] : memref<1x8x8xf32, #tpu.memory_space<vmem>>, vector<1x8x8xf32>
    %5 = vector.shape_cast %4 : vector<1x8x8xf32> to vector<8x8xf32>
    %c0_5 = arith.constant 0 : index
    %c0_6 = arith.constant 0 : index
    %c0_7 = arith.constant 0 : index
    %6 = vector.load %arg5[%c0_5, %c0_6, %c0_7] : memref<1x8x1xf32, #tpu.memory_space<vmem>>, vector<1x8x1xf32>
    %7 = vector.shape_cast %6 : vector<1x8x1xf32> to vector<8x1xf32>
    %c0_8 = arith.constant 0 : index
    %c0_9 = arith.constant 0 : index
    %c0_10 = arith.constant 0 : index
    %8 = vector.load %arg7[%c0_8, %c0_9, %c0_10] : memref<1x1x32xf32, #tpu.memory_space<vmem>>, vector<1x1x32xf32>
    %9 = vector.shape_cast %8 : vector<1x1x32xf32> to vector<1x32xf32>
    %c0_11 = arith.constant 0 : index
    %c0_12 = arith.constant 0 : index
    %c0_13 = arith.constant 0 : index
    %10 = vector.load %arg8[%c0_11, %c0_12, %c0_13] : memref<1x1x32xf32, #tpu.memory_space<vmem>>, vector<1x1x32xf32>
    %11 = vector.shape_cast %10 : vector<1x1x32xf32> to vector<1x32xf32>
    %cst = arith.constant dense<0.000000e+00> : vector<8xf32>
    %12 = vector.multi_reduction <add>, %3, %cst [1] : vector<8x32xf32> to vector<8xf32>
    %13 = vector.shape_cast %12 : vector<8xf32> to vector<8x1xf32>
    %cst_14 = arith.constant 3.200000e+01 : f32
    %14 = vector.broadcast %cst_14 : f32 to vector<8x1xf32>
    %15 = arith.divf %13, %14 : vector<8x1xf32>
    %16 = vector.broadcast %15 : vector<8x1xf32> to vector<8x32xf32>
    %17 = arith.subf %3, %16 : vector<8x32xf32>
    %18 = arith.mulf %17, %17 : vector<8x32xf32>
    %cst_15 = arith.constant dense<0.000000e+00> : vector<8xf32>
    %19 = vector.multi_reduction <add>, %18, %cst_15 [1] : vector<8x32xf32> to vector<8xf32>
    %20 = vector.shape_cast %19 : vector<8xf32> to vector<8x1xf32>
    %cst_16 = arith.constant 3.200000e+01 : f32
    %21 = vector.broadcast %cst_16 : f32 to vector<8x1xf32>
    %22 = arith.divf %20, %21 : vector<8x1xf32>
    %23 = vector.broadcast %15 : vector<8x1xf32> to vector<8x32xf32>
    %24 = arith.subf %3, %23 : vector<8x32xf32>
    %cst_17 = arith.constant 9.99999974E-6 : f32
    %25 = vector.broadcast %cst_17 : f32 to vector<8x1xf32>
    %26 = arith.addf %22, %25 : vector<8x1xf32>
    %27 = math.rsqrt %26 : vector<8x1xf32>
    %28 = vector.broadcast %27 : vector<8x1xf32> to vector<8x32xf32>
    %29 = arith.mulf %24, %28 : vector<8x32xf32>
    %30 = vector.broadcast %9 : vector<1x32xf32> to vector<8x32xf32>
    %31 = arith.mulf %29, %30 : vector<8x32xf32>
    %32 = vector.broadcast %11 : vector<1x32xf32> to vector<8x32xf32>
    %33 = arith.addf %31, %32 : vector<8x32xf32>
    %34 = arith.truncf %33 : vector<8x32xf32> to vector<8x32xbf16>
    %35 = vector.shape_cast %34 : vector<8x32xbf16> to vector<1x8x32xbf16>
    %36 = vector.shape_cast %35 : vector<1x8x32xbf16> to vector<1x8x32xbf16>
    %37 = vector.broadcast %36 : vector<1x8x32xbf16> to vector<12x8x32xbf16>
    %c0_18 = arith.constant 0 : index
    %c0_19 = arith.constant 0 : index
    %c0_20 = arith.constant 0 : index
    %c0_21 = arith.constant 0 : index
    %38 = vector.load %arg9[%c0_18, %c0_19, %c0_20, %c0_21] : memref<1x12x32x8xbf16, #tpu.memory_space<vmem>>, vector<1x12x32x8xbf16>
    %39 = vector.shape_cast %38 : vector<1x12x32x8xbf16> to vector<12x32x8xbf16>
    "tpu.trace_start"() <{level = 10 : i32, message = "psw,pwd->psd"}> : () -> ()
    %cst_22 = arith.constant dense<0.000000e+00> : vector<12x8x8xf32>
    %40 = tpu.matmul %37, %39, %cst_22 {dimension_numbers = #tpu.dot_dimension_numbers<[2], [1], [1], [2], [0, 0, 0, 1, 1, 2], [0], [0]>} : vector<12x8x32xbf16>, vector<12x32x8xbf16>, vector<12x8x8xf32> -> vector<12x8x8xf32>
    "tpu.trace_stop"() : () -> ()
    %c0_23 = arith.constant 0 : index
    %c0_24 = arith.constant 0 : index
    %c0_25 = arith.constant 0 : index
    %c0_26 = arith.constant 0 : index
    %41 = vector.load %arg10[%c0_23, %c0_24, %c0_25, %c0_26] : memref<1x12x1x8xf32, #tpu.memory_space<vmem>>, vector<1x12x1x8xf32>
    %42 = vector.shape_cast %41 : vector<1x12x1x8xf32> to vector<12x1x8xf32>
    %43 = vector.broadcast %42 : vector<12x1x8xf32> to vector<12x8x8xf32>
    %44 = arith.addf %40, %43 : vector<12x8x8xf32>
    %45 = vector.extract_strided_slice %44 {offsets = [0, 0, 0], sizes = [4, 8, 8], strides = [1, 1, 1]} : vector<12x8x8xf32> to vector<4x8x8xf32>
    %46 = arith.truncf %45 : vector<4x8x8xf32> to vector<4x8x8xbf16>
    %47 = vector.extract_strided_slice %44 {offsets = [4, 0, 0], sizes = [4, 8, 8], strides = [1, 1, 1]} : vector<12x8x8xf32> to vector<4x8x8xf32>
    %48 = arith.truncf %47 : vector<4x8x8xf32> to vector<4x8x8xbf16>
    %49 = vector.extract_strided_slice %44 {offsets = [8, 0, 0], sizes = [4, 8, 8], strides = [1, 1, 1]} : vector<12x8x8xf32> to vector<4x8x8xf32>
    %50 = arith.truncf %49 : vector<4x8x8xf32> to vector<4x8x8xbf16>
    "tpu.trace_start"() <{level = 10 : i32, message = "hqd,hkd->hqk"}> : () -> ()
    %cst_27 = arith.constant dense<0.000000e+00> : vector<4x8x8xf32>
    %51 = tpu.matmul %46, %48, %cst_27 {dimension_numbers = #tpu.dot_dimension_numbers<[2], [2], [1], [1], [0, 0, 0, 1, 1, 1], [0], [0]>} : vector<4x8x8xbf16>, vector<4x8x8xbf16>, vector<4x8x8xf32> -> vector<4x8x8xf32>
    "tpu.trace_stop"() : () -> ()
    %52 = vector.shape_cast %5 : vector<8x8xf32> to vector<1x8x8xf32>
    %53 = vector.broadcast %52 : vector<1x8x8xf32> to vector<4x8x8xf32>
    %54 = arith.addf %51, %53 : vector<4x8x8xf32>
    %cst_28 = arith.constant dense<0xFF800000> : vector<4x8xf32>
    %55 = vector.multi_reduction <maximumf>, %54, %cst_28 [2] : vector<4x8x8xf32> to vector<4x8xf32>
    %56 = vector.shape_cast %55 : vector<4x8xf32> to vector<4x8x1xf32>
    %57 = vector.broadcast %56 : vector<4x8x1xf32> to vector<4x8x8xf32>
    %58 = arith.subf %54, %57 : vector<4x8x8xf32>
    %59 = math.exp %58 : vector<4x8x8xf32>
    %cst_29 = arith.constant dense<0.000000e+00> : vector<4x8xf32>
    %60 = vector.multi_reduction <add>, %59, %cst_29 [2] : vector<4x8x8xf32> to vector<4x8xf32>
    %61 = vector.shape_cast %60 : vector<4x8xf32> to vector<4x8x1xf32>
    %62 = tpu.reciprocal %61 {approx = true} : vector<4x8x1xf32> -> vector<4x8x1xf32>
    %63 = vector.broadcast %62 : vector<4x8x1xf32> to vector<4x8x8xf32>
    %64 = arith.mulf %59, %63 : vector<4x8x8xf32>
    %65 = arith.truncf %64 : vector<4x8x8xf32> to vector<4x8x8xbf16>
    "tpu.trace_start"() <{level = 10 : i32, message = "hqk,hkd->hqd"}> : () -> ()
    %cst_30 = arith.constant dense<0.000000e+00> : vector<4x8x8xf32>
    %66 = tpu.matmul %65, %50, %cst_30 {dimension_numbers = #tpu.dot_dimension_numbers<[2], [1], [1], [2], [0, 0, 0, 1, 1, 2], [0], [0]>} : vector<4x8x8xbf16>, vector<4x8x8xbf16>, vector<4x8x8xf32> -> vector<4x8x8xf32>
    "tpu.trace_stop"() : () -> ()
    %67 = arith.truncf %66 : vector<4x8x8xf32> to vector<4x8x8xbf16>
    %c0_31 = arith.constant 0 : index
    %c0_32 = arith.constant 0 : index
    %c0_33 = arith.constant 0 : index
    %c0_34 = arith.constant 0 : index
    %68 = vector.load %arg11[%c0_31, %c0_32, %c0_33, %c0_34] : memref<1x4x8x32xbf16, #tpu.memory_space<vmem>>, vector<1x4x8x32xbf16>
    %69 = vector.shape_cast %68 : vector<1x4x8x32xbf16> to vector<4x8x32xbf16>
    "tpu.trace_start"() <{level = 10 : i32, message = "hqd,hdw->hqw"}> : () -> ()
    %cst_35 = arith.constant dense<0.000000e+00> : vector<4x8x32xf32>
    %70 = tpu.matmul %67, %69, %cst_35 {dimension_numbers = #tpu.dot_dimension_numbers<[2], [1], [1], [2], [0, 0, 0, 1, 1, 2], [0], [0]>} : vector<4x8x8xbf16>, vector<4x8x32xbf16>, vector<4x8x32xf32> -> vector<4x8x32xf32>
    "tpu.trace_stop"() : () -> ()
    %cst_36 = arith.constant dense<0.000000e+00> : vector<8x32xf32>
    %71 = vector.multi_reduction <add>, %70, %cst_36 [0] : vector<4x8x32xf32> to vector<8x32xf32>
    %c0_37 = arith.constant 0 : index
    %c0_38 = arith.constant 0 : index
    %c0_39 = arith.constant 0 : index
    %72 = vector.load %arg12[%c0_37, %c0_38, %c0_39] : memref<1x1x32xf32, #tpu.memory_space<vmem>>, vector<1x1x32xf32>
    %73 = vector.shape_cast %72 : vector<1x1x32xf32> to vector<1x32xf32>
    %74 = vector.broadcast %73 : vector<1x32xf32> to vector<8x32xf32>
    %75 = arith.addf %71, %74 : vector<8x32xf32>
    %76 = vector.broadcast %7 : vector<8x1xf32> to vector<8x32xf32>
    %77 = arith.mulf %76, %75 : vector<8x32xf32>
    %78 = arith.addf %3, %77 : vector<8x32xf32>
    %c0_40 = arith.constant 0 : index
    %c0_41 = arith.constant 0 : index
    %c0_42 = arith.constant 0 : index
    %79 = vector.load %arg13[%c0_40, %c0_41, %c0_42] : memref<1x1x32xf32, #tpu.memory_space<vmem>>, vector<1x1x32xf32>
    %80 = vector.shape_cast %79 : vector<1x1x32xf32> to vector<1x32xf32>
    %c0_43 = arith.constant 0 : index
    %c0_44 = arith.constant 0 : index
    %c0_45 = arith.constant 0 : index
    %81 = vector.load %arg14[%c0_43, %c0_44, %c0_45] : memref<1x1x32xf32, #tpu.memory_space<vmem>>, vector<1x1x32xf32>
    %82 = vector.shape_cast %81 : vector<1x1x32xf32> to vector<1x32xf32>
    %cst_46 = arith.constant dense<0.000000e+00> : vector<8xf32>
    %83 = vector.multi_reduction <add>, %78, %cst_46 [1] : vector<8x32xf32> to vector<8xf32>
    %84 = vector.shape_cast %83 : vector<8xf32> to vector<8x1xf32>
    %cst_47 = arith.constant 3.200000e+01 : f32
    %85 = vector.broadcast %cst_47 : f32 to vector<8x1xf32>
    %86 = arith.divf %84, %85 : vector<8x1xf32>
    %87 = vector.broadcast %86 : vector<8x1xf32> to vector<8x32xf32>
    %88 = arith.subf %78, %87 : vector<8x32xf32>
    %89 = arith.mulf %88, %88 : vector<8x32xf32>
    %cst_48 = arith.constant dense<0.000000e+00> : vector<8xf32>
    %90 = vector.multi_reduction <add>, %89, %cst_48 [1] : vector<8x32xf32> to vector<8xf32>
    %91 = vector.shape_cast %90 : vector<8xf32> to vector<8x1xf32>
    %cst_49 = arith.constant 3.200000e+01 : f32
    %92 = vector.broadcast %cst_49 : f32 to vector<8x1xf32>
    %93 = arith.divf %91, %92 : vector<8x1xf32>
    %94 = vector.broadcast %86 : vector<8x1xf32> to vector<8x32xf32>
    %95 = arith.subf %78, %94 : vector<8x32xf32>
    %cst_50 = arith.constant 9.99999974E-6 : f32
    %96 = vector.broadcast %cst_50 : f32 to vector<8x1xf32>
    %97 = arith.addf %93, %96 : vector<8x1xf32>
    %98 = math.rsqrt %97 : vector<8x1xf32>
    %99 = vector.broadcast %98 : vector<8x1xf32> to vector<8x32xf32>
    %100 = arith.mulf %95, %99 : vector<8x32xf32>
    %101 = vector.broadcast %80 : vector<1x32xf32> to vector<8x32xf32>
    %102 = arith.mulf %100, %101 : vector<8x32xf32>
    %103 = vector.broadcast %82 : vector<1x32xf32> to vector<8x32xf32>
    %104 = arith.addf %102, %103 : vector<8x32xf32>
    %105 = arith.truncf %104 : vector<8x32xf32> to vector<8x32xbf16>
    %c0_51 = arith.constant 0 : index
    %c0_52 = arith.constant 0 : index
    %c0_53 = arith.constant 0 : index
    %106 = vector.load %arg15[%c0_51, %c0_52, %c0_53] : memref<1x32x128xbf16, #tpu.memory_space<vmem>>, vector<1x32x128xbf16>
    %107 = vector.shape_cast %106 : vector<1x32x128xbf16> to vector<32x128xbf16>
    %cst_54 = arith.constant dense<0.000000e+00> : vector<8x128xf32>
    %108 = tpu.matmul %105, %107, %cst_54 {dimension_numbers = #tpu.dot_dimension_numbers<[1], [0], [0], [1], [0, 0, 1, 1], [], []>} : vector<8x32xbf16>, vector<32x128xbf16>, vector<8x128xf32> -> vector<8x128xf32>
    %c0_55 = arith.constant 0 : index
    %c0_56 = arith.constant 0 : index
    %c0_57 = arith.constant 0 : index
    %109 = vector.load %arg16[%c0_55, %c0_56, %c0_57] : memref<1x1x128xf32, #tpu.memory_space<vmem>>, vector<1x1x128xf32>
    %110 = vector.shape_cast %109 : vector<1x1x128xf32> to vector<1x128xf32>
    %111 = vector.broadcast %110 : vector<1x128xf32> to vector<8x128xf32>
    %112 = arith.addf %108, %111 : vector<8x128xf32>
    %cst_58 = arith.constant 5.000000e-01 : f32
    %113 = vector.broadcast %cst_58 : f32 to vector<8x128xf32>
    %114 = arith.mulf %113, %112 : vector<8x128xf32>
    %cst_59 = arith.constant 0.707106769 : f32
    %115 = vector.broadcast %cst_59 : f32 to vector<8x128xf32>
    %116 = arith.mulf %112, %115 : vector<8x128xf32>
    %117 = math.erf %116 : vector<8x128xf32>
    %cst_60 = arith.constant 1.000000e+00 : f32
    %118 = vector.broadcast %cst_60 : f32 to vector<8x128xf32>
    %119 = arith.addf %118, %117 : vector<8x128xf32>
    %120 = arith.mulf %114, %119 : vector<8x128xf32>
    %121 = arith.truncf %120 : vector<8x128xf32> to vector<8x128xbf16>
    %c0_61 = arith.constant 0 : index
    %c0_62 = arith.constant 0 : index
    %c0_63 = arith.constant 0 : index
    %122 = vector.load %arg17[%c0_61, %c0_62, %c0_63] : memref<1x128x32xbf16, #tpu.memory_space<vmem>>, vector<1x128x32xbf16>
    %123 = vector.shape_cast %122 : vector<1x128x32xbf16> to vector<128x32xbf16>
    %cst_64 = arith.constant dense<0.000000e+00> : vector<8x32xf32>
    %124 = tpu.matmul %121, %123, %cst_64 {dimension_numbers = #tpu.dot_dimension_numbers<[1], [0], [0], [1], [0, 0, 1, 1], [], []>} : vector<8x128xbf16>, vector<128x32xbf16>, vector<8x32xf32> -> vector<8x32xf32>
    %c0_65 = arith.constant 0 : index
    %c0_66 = arith.constant 0 : index
    %c0_67 = arith.constant 0 : index
    %125 = vector.load %arg18[%c0_65, %c0_66, %c0_67] : memref<1x1x32xf32, #tpu.memory_space<vmem>>, vector<1x1x32xf32>
    %126 = vector.shape_cast %125 : vector<1x1x32xf32> to vector<1x32xf32>
    %127 = vector.broadcast %126 : vector<1x32xf32> to vector<8x32xf32>
    %128 = arith.addf %124, %127 : vector<8x32xf32>
    %129 = vector.broadcast %7 : vector<8x1xf32> to vector<8x32xf32>
    %130 = arith.mulf %129, %128 : vector<8x32xf32>
    %131 = arith.addf %78, %130 : vector<8x32xf32>
    %c0_68 = arith.constant 0 : index
    %c0_69 = arith.constant 0 : index
    %132 = vector.load %arg22[%c0_68, %c0_69] : memref<8x32xf32, #tpu.memory_space<vmem>>, vector<8x32xf32>
    tpu.vector_store %arg22[%c0_68, %c0_69], %131 {strides = array<i32>} : memref<8x32xf32, #tpu.memory_space<vmem>>, vector<8x32xf32>,
    %c13_i32 = arith.constant 13 : i32
    %133 = arith.cmpi eq, %arg1, %c13_i32 : i32
    %134 = arith.extui %133 : i1 to i32
    %c0_i32_70 = arith.constant 0 : i32
    %135 = arith.cmpi ne, %134, %c0_i32_70 : i32
    scf.if %135 {
      %c0_71 = arith.constant 0 : index
      %c0_72 = arith.constant 0 : index
      %136 = vector.load %arg6[%c0_71, %c0_72] : memref<2x8xf32, #tpu.memory_space<vmem>>, vector<2x8xf32>
      %cst_73 = arith.constant dense<0.000000e+00> : vector<2x32xf32>
      %137 = tpu.matmul %136, %131, %cst_73 {dimension_numbers = #tpu.dot_dimension_numbers<[1], [0], [0], [1], [0, 0, 1, 1], [], []>} : vector<2x8xf32>, vector<8x32xf32>, vector<2x32xf32> -> vector<2x32xf32>
      %138 = arith.truncf %137 : vector<2x32xf32> to vector<2x32xbf16>
      %c0_74 = arith.constant 0 : index
      %c0_75 = arith.constant 0 : index
      %139 = vector.load %arg19[%c0_74, %c0_75] : memref<32x32xbf16, #tpu.memory_space<vmem>>, vector<32x32xbf16>
      %cst_76 = arith.constant dense<0.000000e+00> : vector<2x32xf32>
      %140 = tpu.matmul %138, %139, %cst_76 {dimension_numbers = #tpu.dot_dimension_numbers<[1], [0], [0], [1], [0, 0, 1, 1], [], []>} : vector<2x32xbf16>, vector<32x32xbf16>, vector<2x32xf32> -> vector<2x32xf32>
      %c0_77 = arith.constant 0 : index
      %c0_78 = arith.constant 0 : index
      %141 = vector.load %arg20[%c0_77, %c0_78] : memref<1x32xf32, #tpu.memory_space<vmem>>, vector<1x32xf32>
      %142 = vector.broadcast %141 : vector<1x32xf32> to vector<2x32xf32>
      %143 = arith.addf %140, %142 : vector<2x32xf32>
      %144 = tpu.concatenate %137, %143 in 1 : vector<2x32xf32>, vector<2x32xf32> -> vector<2x64xf32>
      %c0_79 = arith.constant 0 : index
      %c0_80 = arith.constant 0 : index
      %c0_81 = arith.constant 0 : index
      %145 = vector.load %arg21[%c0_79, %c0_80, %c0_81] : memref<1x2x64xf32, #tpu.memory_space<vmem>>, vector<1x2x64xf32>
      %146 = vector.shape_cast %145 : vector<1x2x64xf32> to vector<2x64xf32>
      %147 = vector.shape_cast %144 : vector<2x64xf32> to vector<1x2x64xf32>
      tpu.vector_store %arg21[%c0_79, %c0_80, %c0_81], %147 {strides = array<i32>} : memref<1x2x64xf32, #tpu.memory_space<vmem>>, vector<1x2x64xf32>,
    } else {
    }
    return
  }
  func.func @transform_0(%arg0: i32, %arg1: i32, %arg2: memref<14xi32, #tpu.memory_space<smem>>) -> (i32, i32, i32) {
    %c0_i32 = arith.constant 0 : i32
    %c0_i32_0 = arith.constant 0 : i32
    %c0_i32_1 = arith.constant 0 : i32
    return %arg0, %c0_i32, %c0_i32_0 : i32, i32, i32
  }
  func.func @transform_1(%arg0: i32, %arg1: i32, %arg2: memref<14xi32, #tpu.memory_space<smem>>) -> (i32, i32, i32) {
    %0 = arith.index_cast %arg1 : i32 to index
    %1 = memref.load %arg2[%0] : memref<14xi32, #tpu.memory_space<smem>>
    %c0_i32 = arith.constant 0 : i32
    %c0_i32_0 = arith.constant 0 : i32
    %c0_i32_1 = arith.constant 0 : i32
    return %1, %c0_i32, %c0_i32_0 : i32, i32, i32
  }
  func.func @transform_2(%arg0: i32, %arg1: i32, %arg2: memref<14xi32, #tpu.memory_space<smem>>) -> (i32, i32, i32) {
    %0 = arith.index_cast %arg1 : i32 to index
    %1 = memref.load %arg2[%0] : memref<14xi32, #tpu.memory_space<smem>>
    %c0_i32 = arith.constant 0 : i32
    %c0_i32_0 = arith.constant 0 : i32
    %c0_i32_1 = arith.constant 0 : i32
    return %1, %c0_i32, %c0_i32_0 : i32, i32, i32
  }
  func.func @transform_3(%arg0: i32, %arg1: i32, %arg2: memref<14xi32, #tpu.memory_space<smem>>) -> (i32, i32) {
    %c0_i32 = arith.constant 0 : i32
    %c0_i32_0 = arith.constant 0 : i32
    %c0_i32_1 = arith.constant 0 : i32
    return %c0_i32, %c0_i32_0 : i32, i32
  }
  func.func @transform_4(%arg0: i32, %arg1: i32, %arg2: memref<14xi32, #tpu.memory_space<smem>>) -> (i32, i32, i32) {
    %c0_i32 = arith.constant 0 : i32
    %c0_i32_0 = arith.constant 0 : i32
    %c0_i32_1 = arith.constant 0 : i32
    return %arg1, %c0_i32, %c0_i32_0 : i32, i32, i32
  }
  func.func @transform_5(%arg0: i32, %arg1: i32, %arg2: memref<14xi32, #tpu.memory_space<smem>>) -> (i32, i32, i32) {
    %c0_i32 = arith.constant 0 : i32
    %c0_i32_0 = arith.constant 0 : i32
    %c0_i32_1 = arith.constant 0 : i32
    return %arg1, %c0_i32, %c0_i32_0 : i32, i32, i32
  }
  func.func @transform_6(%arg0: i32, %arg1: i32, %arg2: memref<14xi32, #tpu.memory_space<smem>>) -> (i32, i32, i32, i32) {
    %c0_i32 = arith.constant 0 : i32
    %c0_i32_0 = arith.constant 0 : i32
    %c0_i32_1 = arith.constant 0 : i32
    %c0_i32_2 = arith.constant 0 : i32
    return %arg1, %c0_i32, %c0_i32_0, %c0_i32_1 : i32, i32, i32, i32
  }
  func.func @transform_7(%arg0: i32, %arg1: i32, %arg2: memref<14xi32, #tpu.memory_space<smem>>) -> (i32, i32, i32, i32) {
    %c0_i32 = arith.constant 0 : i32
    %c0_i32_0 = arith.constant 0 : i32
    %c0_i32_1 = arith.constant 0 : i32
    %c0_i32_2 = arith.constant 0 : i32
    return %arg1, %c0_i32, %c0_i32_0, %c0_i32_1 : i32, i32, i32, i32
  }
  func.func @transform_8(%arg0: i32, %arg1: i32, %arg2: memref<14xi32, #tpu.memory_space<smem>>) -> (i32, i32, i32, i32) {
    %c0_i32 = arith.constant 0 : i32
    %c0_i32_0 = arith.constant 0 : i32
    %c0_i32_1 = arith.constant 0 : i32
    %c0_i32_2 = arith.constant 0 : i32
    return %arg1, %c0_i32, %c0_i32_0, %c0_i32_1 : i32, i32, i32, i32
  }
  func.func @transform_9(%arg0: i32, %arg1: i32, %arg2: memref<14xi32, #tpu.memory_space<smem>>) -> (i32, i32, i32) {
    %c0_i32 = arith.constant 0 : i32
    %c0_i32_0 = arith.constant 0 : i32
    %c0_i32_1 = arith.constant 0 : i32
    return %arg1, %c0_i32, %c0_i32_0 : i32, i32, i32
  }
  func.func @transform_10(%arg0: i32, %arg1: i32, %arg2: memref<14xi32, #tpu.memory_space<smem>>) -> (i32, i32, i32) {
    %c0_i32 = arith.constant 0 : i32
    %c0_i32_0 = arith.constant 0 : i32
    %c0_i32_1 = arith.constant 0 : i32
    return %arg1, %c0_i32, %c0_i32_0 : i32, i32, i32
  }
  func.func @transform_11(%arg0: i32, %arg1: i32, %arg2: memref<14xi32, #tpu.memory_space<smem>>) -> (i32, i32, i32) {
    %c0_i32 = arith.constant 0 : i32
    %c0_i32_0 = arith.constant 0 : i32
    %c0_i32_1 = arith.constant 0 : i32
    return %arg1, %c0_i32, %c0_i32_0 : i32, i32, i32
  }
  func.func @transform_12(%arg0: i32, %arg1: i32, %arg2: memref<14xi32, #tpu.memory_space<smem>>) -> (i32, i32, i32) {
    %c0_i32 = arith.constant 0 : i32
    %c0_i32_0 = arith.constant 0 : i32
    %c0_i32_1 = arith.constant 0 : i32
    return %arg1, %c0_i32, %c0_i32_0 : i32, i32, i32
  }
  func.func @transform_13(%arg0: i32, %arg1: i32, %arg2: memref<14xi32, #tpu.memory_space<smem>>) -> (i32, i32, i32) {
    %c0_i32 = arith.constant 0 : i32
    %c0_i32_0 = arith.constant 0 : i32
    %c0_i32_1 = arith.constant 0 : i32
    return %arg1, %c0_i32, %c0_i32_0 : i32, i32, i32
  }
  func.func @transform_14(%arg0: i32, %arg1: i32, %arg2: memref<14xi32, #tpu.memory_space<smem>>) -> (i32, i32, i32) {
    %c0_i32 = arith.constant 0 : i32
    %c0_i32_0 = arith.constant 0 : i32
    %c0_i32_1 = arith.constant 0 : i32
    return %arg1, %c0_i32, %c0_i32_0 : i32, i32, i32
  }
  func.func @transform_15(%arg0: i32, %arg1: i32, %arg2: memref<14xi32, #tpu.memory_space<smem>>) -> (i32, i32, i32) {
    %c0_i32 = arith.constant 0 : i32
    %c0_i32_0 = arith.constant 0 : i32
    %c0_i32_1 = arith.constant 0 : i32
    return %arg1, %c0_i32, %c0_i32_0 : i32, i32, i32
  }
  func.func @transform_16(%arg0: i32, %arg1: i32, %arg2: memref<14xi32, #tpu.memory_space<smem>>) -> (i32, i32) {
    %c0_i32 = arith.constant 0 : i32
    %c0_i32_0 = arith.constant 0 : i32
    %c0_i32_1 = arith.constant 0 : i32
    return %c0_i32, %c0_i32_0 : i32, i32
  }
  func.func @transform_17(%arg0: i32, %arg1: i32, %arg2: memref<14xi32, #tpu.memory_space<smem>>) -> (i32, i32) {
    %c0_i32 = arith.constant 0 : i32
    %c0_i32_0 = arith.constant 0 : i32
    %c0_i32_1 = arith.constant 0 : i32
    return %c0_i32, %c0_i32_0 : i32, i32
  }
  func.func @transform_18(%arg0: i32, %arg1: i32, %arg2: memref<14xi32, #tpu.memory_space<smem>>) -> (i32, i32, i32) {
    %c0_i32 = arith.constant 0 : i32
    %c0_i32_0 = arith.constant 0 : i32
    %c0_i32_1 = arith.constant 0 : i32
    return %arg0, %c0_i32, %c0_i32_0 : i32, i32, i32
  }
}

</mosaic_0001>

<llo_original>
// kernel: nes_forward.1
$region0: #{nes_forward.1}
  #allocation0 [shape = 'u32[]', space=smem, size = 0x4, offset = 0x4, fixed_abs, tag = 'smem constant byte address 0x4 - core index']
  #allocation1 [shape = 'u32[72,128]{1,0:T(1,128)}', space=vmem, size = 0x9000, scoped, tag = 'internal scratch']
  #allocation2 [shape = 'f32[8,32]{1,0:T(8,128)}', space=vmem, size = 0x1000, scoped, tag = 'scratch operand']
  #allocation3 [shape = 's32[1]{0}', space=sflag, size = 0x4, scoped, tag = 'scoped memory for nes_forward.1']
  #allocation4 [shape = 'u8[512]{0}', space=smem, size = 0x200, scoped, tag = 'prefetched SMEM operand 0']
  %s0 = inlined_call_operand.vmem [shape: s32[14], index: 0, kind: input, shape index: {}]
  %s1 = inlined_call_operand.vmem [shape: f32[2,8,32], index: 1, kind: input, shape index: {}]
  %s2 = inlined_call_operand.vmem [shape: f32[3,8,8], index: 2, kind: input, shape index: {}]
  %s3 = inlined_call_operand.vmem [shape: f32[3,8,1], index: 3, kind: input, shape index: {}]
  %s4 = inlined_call_operand.vmem [shape: f32[2,8], index: 4, kind: input, shape index: {}]
  %s5 = inlined_call_operand.vmem [shape: f32[14,1,32], index: 5, kind: input, shape index: {}]
  %s6 = inlined_call_operand.vmem [shape: f32[14,1,32], index: 6, kind: input, shape index: {}]
  %s7 = inlined_call_operand.vmem [shape: bf16[14,12,32,8], index: 7, kind: input, shape index: {}]
  %s8 = inlined_call_operand.vmem [shape: f32[14,12,1,8], index: 8, kind: input, shape index: {}]
  %s9 = inlined_call_operand.vmem [shape: bf16[14,4,8,32], index: 9, kind: input, shape index: {}]
  %s10 = inlined_call_operand.vmem [shape: f32[14,1,32], index: 10, kind: input, shape index: {}]
  %s11 = inlined_call_operand.vmem [shape: f32[14,1,32], index: 11, kind: input, shape index: {}]
  %s12 = inlined_call_operand.vmem [shape: f32[14,1,32], index: 12, kind: input, shape index: {}]
  %s13 = inlined_call_operand.vmem [shape: bf16[14,32,128], index: 13, kind: input, shape index: {}]
  %s14 = inlined_call_operand.vmem [shape: f32[14,1,128], index: 14, kind: input, shape index: {}]
  %s15 = inlined_call_operand.vmem [shape: bf16[14,128,32], index: 15, kind: input, shape index: {}]
  %s16 = inlined_call_operand.vmem [shape: f32[14,1,32], index: 16, kind: input, shape index: {}]
  %s17 = inlined_call_operand.vmem [shape: bf16[32,32], index: 17, kind: input, shape index: {}]
  %s18 = inlined_call_operand.vmem [shape: f32[1,32], index: 18, kind: input, shape index: {}]
  %s19 = inlined_call_operand.vmem [shape: f32[2,2,64], index: 19, kind: output, shape index: {}]
  %s20 = sld [smem:[#allocation0]]
  $region113: #{nes_forward.1} parent=0
    _
  %s22 = ssub.s32 1, %s20
  %s23 = scalar_select 0, %s22, %s20
  %s25 = sshll.u32 %s0, 4
  %s26 = int_to_ptr.vmem [resolvable:$true] %s25
  %28 = dma.vmem_to_smem %s26, 16, [#allocation4], [#allocation3]
  %30 = dma.done [#allocation3], 16
  %31 = sfence
  loop: start=0, step=1, limit=30
  $region2: #{nes_forward.1} parent=0 // loop_pre_header
    _
  $region3: #{nes_forward.1} parent=0 // loop_header
    %s33 = sphi 0, %s37
    %p34 = scmp.ge.s32.totalorder %s33, 30
    %s40 = sphi 0, %s52
    %s41 = sphi 0, %s48
    %s42 = sphi 0, %s40
    %s43 = sphi 0, %s41
    %s44 = sphi 0, %s42
    %s45 = sphi 0, %s43
    %s55 = sphi 0, %s57
    %s58 = sphi 0, %s55
    %s59 = sphi 0, %s58
    %s75 = sphi 0, %s59
    %s83 = sphi 0, %s85
    %s86 = sphi 0, %s83
    %s87 = sphi 0, %s86
    %s103 = sphi 0, %s87
    %s111 = sphi 0, %s113
    %s114 = sphi 0, %s111
    %s115 = sphi 0, %s114
    %s131 = sphi 0, %s115
    %s135 = sphi 0, %s135
    %s137 = sphi 0, %s135
    %s138 = sphi 0, %s137
    %s152 = sphi 0, %s138
    %s158 = sphi 0, %s160
    %s161 = sphi 0, %s158
    %s162 = sphi 0, %s161
    %s178 = sphi 0, %s162
    %s184 = sphi 0, %s186
    %s187 = sphi 0, %s184
    %s188 = sphi 0, %s187
    %s204 = sphi 0, %s188
    %s210 = sphi 0, %s212
    %s213 = sphi 0, %s210
    %s214 = sphi 0, %s213
    %s230 = sphi 0, %s214
    %s236 = sphi 0, %s238
    %s239 = sphi 0, %s236
    %s240 = sphi 0, %s239
    %s256 = sphi 0, %s240
    %s262 = sphi 0, %s264
    %s265 = sphi 0, %s262
    %s266 = sphi 0, %s265
    %s282 = sphi 0, %s266
    %s288 = sphi 0, %s290
    %s291 = sphi 0, %s288
    %s292 = sphi 0, %s291
    %s308 = sphi 0, %s292
    %s314 = sphi 0, %s316
    %s317 = sphi 0, %s314
    %s318 = sphi 0, %s317
    %s334 = sphi 0, %s318
    %s340 = sphi 0, %s342
    %s343 = sphi 0, %s340
    %s344 = sphi 0, %s343
    %s360 = sphi 0, %s344
    %s366 = sphi 0, %s368
    %s369 = sphi 0, %s366
    %s370 = sphi 0, %s369
    %s386 = sphi 0, %s370
    %s392 = sphi 0, %s394
    %s395 = sphi 0, %s392
    %s396 = sphi 0, %s395
    %s412 = sphi 0, %s396
    %s418 = sphi 0, %s420
    %s421 = sphi 0, %s418
    %s422 = sphi 0, %s421
    %s438 = sphi 0, %s422
    %s444 = sphi 0, %s446
    %s447 = sphi 0, %s444
    %s448 = sphi 0, %s447
    %s464 = sphi 0, %s448
    %s468 = sphi 0, %s468
    %s470 = sphi 0, %s468
    %s471 = sphi 0, %s470
    %s485 = sphi 0, %s471
    %s489 = sphi 0, %s489
    %s491 = sphi 0, %s489
    %s492 = sphi 0, %s491
    %s506 = sphi 0, %s492
    %s512 = sphi 0, %s514
    %s515 = sphi 0, %s512
    %s516 = sphi 0, %s515
    %s532 = sphi 0, %s516
  $region4: #{nes_forward.1} parent=0 // loop_header_branch
    %36 = sbr.rel (%p34) target = $region8
  $region5: #{nes_forward.1} parent=0 // loop_body
    %s38 = ssub.s32 %s33, 1
    %s39 = ssub.s32 %s33, 2
    %s46 = sadd.s32 1, %s41
    %p47 = scmp.ge.s32.totalorder %s46, 14
    %s48 = scalar_select %p47, 0, %s46
    %s49 = sadd.s32 1, %s40
    %s50 = scalar_select %p47, %s49, %s40
    %p51 = scmp.ge.s32.totalorder %s50, 2
    %s52 = scalar_select %p51, 0, %s50
    %s53 = ssub.s32 %s40, %s52
    %p54 = scmp.eq.s32.totalorder %s53, 0
    %s56 = sadd.s32 %s55, 1
    %s57 = scalar_select %p54, %s55, %s56
    %p60 = pneg %p54
    %p61 = scmp.eq.s32.totalorder %s33, 27
    %p62 = por %p60, %p61
    %p63 = scmp.ne.s32.totalorder %s55, %s58
    %p64 = scmp.eq.s32.totalorder %s33, 0
    %p65 = por %p63, %p64
    %p66 = scmp.ne.s32.totalorder %s55, %s58
    %p67 = scmp.eq.s32.totalorder %s38, 27
    %p68 = por %p66, %p67
    %p69 = scmp.ne.s32.totalorder %s58, %s59
    %p70 = scmp.eq.s32.totalorder %s38, 0
    %p71 = por %p69, %p70
    %p72 = scmp.ne.s32.totalorder %s58, %s59
    %p73 = scmp.eq.s32.totalorder %s39, 27
    %p74 = por %p72, %p73
    %p76 = scmp.ne.s32.totalorder %s59, %s75
    %p77 = scmp.eq.s32.totalorder %s39, 0
    %p78 = por %p76, %p77
    %s79 = sld [smem:[#allocation4 + %s41]]
    %s80 = sld [smem:[#allocation4 + %s48]]
    %s81 = ssub.s32 %s79, %s80
    %p82 = scmp.eq.s32.totalorder %s81, 0
    %s84 = sadd.s32 %s83, 1
    %s85 = scalar_select %p82, %s83, %s84
    %p88 = pneg %p82
    %p89 = scmp.eq.s32.totalorder %s33, 27
    %p90 = por %p88, %p89
    %p91 = scmp.ne.s32.totalorder %s83, %s86
    %p92 = scmp.eq.s32.totalorder %s33, 0
    %p93 = por %p91, %p92
    %p94 = scmp.ne.s32.totalorder %s83, %s86
    %p95 = scmp.eq.s32.totalorder %s38, 27
    %p96 = por %p94, %p95
    %p97 = scmp.ne.s32.totalorder %s86, %s87
    %p98 = scmp.eq.s32.totalorder %s38, 0
    %p99 = por %p97, %p98
    %p100 = scmp.ne.s32.totalorder %s86, %s87
    %p101 = scmp.eq.s32.totalorder %s39, 27
    %p102 = por %p100, %p101
    %p104 = scmp.ne.s32.totalorder %s87, %s103
    %p105 = scmp.eq.s32.totalorder %s39, 0
    %p106 = por %p104, %p105
    %s107 = sld [smem:[#allocation4 + %s41]]
    %s108 = sld [smem:[#allocation4 + %s48]]
    %s109 = ssub.s32 %s107, %s108
    %p110 = scmp.eq.s32.totalorder %s109, 0
    %s112 = sadd.s32 %s111, 1
    %s113 = scalar_select %p110, %s111, %s112
    %p116 = pneg %p110
    %p117 = scmp.eq.s32.totalorder %s33, 27
    %p118 = por %p116, %p117
    %p119 = scmp.ne.s32.totalorder %s111, %s114
    %p120 = scmp.eq.s32.totalorder %s33, 0
    %p121 = por %p119, %p120
    %p122 = scmp.ne.s32.totalorder %s111, %s114
    %p123 = scmp.eq.s32.totalorder %s38, 27
    %p124 = por %p122, %p123
    %p125 = scmp.ne.s32.totalorder %s114, %s115
    %p126 = scmp.eq.s32.totalorder %s38, 0
    %p127 = por %p125, %p126
    %p128 = scmp.ne.s32.totalorder %s114, %s115
    %p129 = scmp.eq.s32.totalorder %s39, 27
    %p130 = por %p128, %p129
    %p132 = scmp.ne.s32.totalorder %s115, %s131
    %p133 = scmp.eq.s32.totalorder %s39, 0
    %p134 = por %p132, %p133
    %s136 = sadd.s32 %s135, 1
    %p139 = scmp.eq.s32.totalorder %s33, 27
    %p140 = scmp.ne.s32.totalorder %s135, %s137
    %p141 = scmp.eq.s32.totalorder %s33, 0
    %p142 = por %p140, %p141
    %p143 = scmp.ne.s32.totalorder %s135, %s137
    %p144 = scmp.eq.s32.totalorder %s38, 27
    %p145 = por %p143, %p144
    %p146 = scmp.ne.s32.totalorder %s137, %s138
    %p147 = scmp.eq.s32.totalorder %s38, 0
    %p148 = por %p146, %p147
    %p149 = scmp.ne.s32.totalorder %s137, %s138
    %p150 = scmp.eq.s32.totalorder %s39, 27
    %p151 = por %p149, %p150
    %p153 = scmp.ne.s32.totalorder %s138, %s152
    %p154 = scmp.eq.s32.totalorder %s39, 0
    %p155 = por %p153, %p154
    %s156 = ssub.s32 %s41, %s48
    %p157 = scmp.eq.s32.totalorder %s156, 0
    %s159 = sadd.s32 %s158, 1
    %s160 = scalar_select %p157, %s158, %s159
    %p163 = pneg %p157
    %p164 = scmp.eq.s32.totalorder %s33, 27
    %p165 = por %p163, %p164
    %p166 = scmp.ne.s32.totalorder %s158, %s161
    %p167 = scmp.eq.s32.totalorder %s33, 0
    %p168 = por %p166, %p167
    %p169 = scmp.ne.s32.totalorder %s158, %s161
    %p170 = scmp.eq.s32.totalorder %s38, 27
    %p171 = por %p169, %p170
    %p172 = scmp.ne.s32.totalorder %s161, %s162
    %p173 = scmp.eq.s32.totalorder %s38, 0
    %p174 = por %p172, %p173
    %p175 = scmp.ne.s32.totalorder %s161, %s162
    %p176 = scmp.eq.s32.totalorder %s39, 27
    %p177 = por %p175, %p176
    %p179 = scmp.ne.s32.totalorder %s162, %s178
    %p180 = scmp.eq.s32.totalorder %s39, 0
    %p181 = por %p179, %p180
    %s182 = ssub.s32 %s41, %s48
    %p183 = scmp.eq.s32.totalorder %s182, 0
    %s185 = sadd.s32 %s184, 1
    %s186 = scalar_select %p183, %s184, %s185
    %p189 = pneg %p183
    %p190 = scmp.eq.s32.totalorder %s33, 27
    %p191 = por %p189, %p190
    %p192 = scmp.ne.s32.totalorder %s184, %s187
    %p193 = scmp.eq.s32.totalorder %s33, 0
    %p194 = por %p192, %p193
    %p195 = scmp.ne.s32.totalorder %s184, %s187
    %p196 = scmp.eq.s32.totalorder %s38, 27
    %p197 = por %p195, %p196
    %p198 = scmp.ne.s32.totalorder %s187, %s188
    %p199 = scmp.eq.s32.totalorder %s38, 0
    %p200 = por %p198, %p199
    %p201 = scmp.ne.s32.totalorder %s187, %s188
    %p202 = scmp.eq.s32.totalorder %s39, 27
    %p203 = por %p201, %p202
    %p205 = scmp.ne.s32.totalorder %s188, %s204
    %p206 = scmp.eq.s32.totalorder %s39, 0
    %p207 = por %p205, %p206
    %s208 = ssub.s32 %s41, %s48
    %p209 = scmp.eq.s32.totalorder %s208, 0
    %s211 = sadd.s32 %s210, 1
    %s212 = scalar_select %p209, %s210, %s211
    %p215 = pneg %p209
    %p216 = scmp.eq.s32.totalorder %s33, 27
    %p217 = por %p215, %p216
    %p218 = scmp.ne.s32.totalorder %s210, %s213
    %p219 = scmp.eq.s32.totalorder %s33, 0
    %p220 = por %p218, %p219
    %p221 = scmp.ne.s32.totalorder %s210, %s213
    %p222 = scmp.eq.s32.totalorder %s38, 27
    %p223 = por %p221, %p222
    %p224 = scmp.ne.s32.totalorder %s213, %s214
    %p225 = scmp.eq.s32.totalorder %s38, 0
    %p226 = por %p224, %p225
    %p227 = scmp.ne.s32.totalorder %s213, %s214
    %p228 = scmp.eq.s32.totalorder %s39, 27
    %p229 = por %p227, %p228
    %p231 = scmp.ne.s32.totalorder %s214, %s230
    %p232 = scmp.eq.s32.totalorder %s39, 0
    %p233 = por %p231, %p232
    %s234 = ssub.s32 %s41, %s48
    %p235 = scmp.eq.s32.totalorder %s234, 0
    %s237 = sadd.s32 %s236, 1
    %s238 = scalar_select %p235, %s236, %s237
    %p241 = pneg %p235
    %p242 = scmp.eq.s32.totalorder %s33, 27
    %p243 = por %p241, %p242
    %p244 = scmp.ne.s32.totalorder %s236, %s239
    %p245 = scmp.eq.s32.totalorder %s33, 0
    %p246 = por %p244, %p245
    %p247 = scmp.ne.s32.totalorder %s236, %s239
    %p248 = scmp.eq.s32.totalorder %s38, 27
    %p249 = por %p247, %p248
    %p250 = scmp.ne.s32.totalorder %s239, %s240
    %p251 = scmp.eq.s32.totalorder %s38, 0
    %p252 = por %p250, %p251
    %p253 = scmp.ne.s32.totalorder %s239, %s240
    %p254 = scmp.eq.s32.totalorder %s39, 27
    %p255 = por %p253, %p254
    %p257 = scmp.ne.s32.totalorder %s240, %s256
    %p258 = scmp.eq.s32.totalorder %s39, 0
    %p259 = por %p257, %p258
    %s260 = ssub.s32 %s41, %s48
    %p261 = scmp.eq.s32.totalorder %s260, 0
    %s263 = sadd.s32 %s262, 1
    %s264 = scalar_select %p261, %s262, %s263
    %p267 = pneg %p261
    %p268 = scmp.eq.s32.totalorder %s33, 27
    %p269 = por %p267, %p268
    %p270 = scmp.ne.s32.totalorder %s262, %s265
    %p271 = scmp.eq.s32.totalorder %s33, 0
    %p272 = por %p270, %p271
    %p273 = scmp.ne.s32.totalorder %s262, %s265
    %p274 = scmp.eq.s32.totalorder %s38, 27
    %p275 = por %p273, %p274
    %p276 = scmp.ne.s32.totalorder %s265, %s266
    %p277 = scmp.eq.s32.totalorder %s38, 0
    %p278 = por %p276, %p277
    %p279 = scmp.ne.s32.totalorder %s265, %s266
    %p280 = scmp.eq.s32.totalorder %s39, 27
    %p281 = por %p279, %p280
    %p283 = scmp.ne.s32.totalorder %s266, %s282
    %p284 = scmp.eq.s32.totalorder %s39, 0
    %p285 = por %p283, %p284
    %s286 = ssub.s32 %s41, %s48
    %p287 = scmp.eq.s32.totalorder %s286, 0
    %s289 = sadd.s32 %s288, 1
    %s290 = scalar_select %p287, %s288, %s289
    %p293 = pneg %p287
    %p294 = scmp.eq.s32.totalorder %s33, 27
    %p295 = por %p293, %p294
    %p296 = scmp.ne.s32.totalorder %s288, %s291
    %p297 = scmp.eq.s32.totalorder %s33, 0
    %p298 = por %p296, %p297
    %p299 = scmp.ne.s32.totalorder %s288, %s291
    %p300 = scmp.eq.s32.totalorder %s38, 27
    %p301 = por %p299, %p300
    %p302 = scmp.ne.s32.totalorder %s291, %s292
    %p303 = scmp.eq.s32.totalorder %s38, 0
    %p304 = por %p302, %p303
    %p305 = scmp.ne.s32.totalorder %s291, %s292
    %p306 = scmp.eq.s32.totalorder %s39, 27
    %p307 = por %p305, %p306
    %p309 = scmp.ne.s32.totalorder %s292, %s308
    %p310 = scmp.eq.s32.totalorder %s39, 0
    %p311 = por %p309, %p310
    %s312 = ssub.s32 %s41, %s48
    %p313 = scmp.eq.s32.totalorder %s312, 0
    %s315 = sadd.s32 %s314, 1
    %s316 = scalar_select %p313, %s314, %s315
    %p319 = pneg %p313
    %p320 = scmp.eq.s32.totalorder %s33, 27
    %p321 = por %p319, %p320
    %p322 = scmp.ne.s32.totalorder %s314, %s317
    %p323 = scmp.eq.s32.totalorder %s33, 0
    %p324 = por %p322, %p323
    %p325 = scmp.ne.s32.totalorder %s314, %s317
    %p326 = scmp.eq.s32.totalorder %s38, 27
    %p327 = por %p325, %p326
    %p328 = scmp.ne.s32.totalorder %s317, %s318
    %p329 = scmp.eq.s32.totalorder %s38, 0
    %p330 = por %p328, %p329
    %p331 = scmp.ne.s32.totalorder %s317, %s318
    %p332 = scmp.eq.s32.totalorder %s39, 27
    %p333 = por %p331, %p332
    %p335 = scmp.ne.s32.totalorder %s318, %s334
    %p336 = scmp.eq.s32.totalorder %s39, 0
    %p337 = por %p335, %p336
    %s338 = ssub.s32 %s41, %s48
    %p339 = scmp.eq.s32.totalorder %s338, 0
    %s341 = sadd.s32 %s340, 1
    %s342 = scalar_select %p339, %s340, %s341
    %p345 = pneg %p339
    %p346 = scmp.eq.s32.totalorder %s33, 27
    %p347 = por %p345, %p346
    %p348 = scmp.ne.s32.totalorder %s340, %s343
    %p349 = scmp.eq.s32.totalorder %s33, 0
    %p350 = por %p348, %p349
    %p351 = scmp.ne.s32.totalorder %s340, %s343
    %p352 = scmp.eq.s32.totalorder %s38, 27
    %p353 = por %p351, %p352
    %p354 = scmp.ne.s32.totalorder %s343, %s344
    %p355 = scmp.eq.s32.totalorder %s38, 0
    %p356 = por %p354, %p355
    %p357 = scmp.ne.s32.totalorder %s343, %s344
    %p358 = scmp.eq.s32.totalorder %s39, 27
    %p359 = por %p357, %p358
    %p361 = scmp.ne.s32.totalorder %s344, %s360
    %p362 = scmp.eq.s32.totalorder %s39, 0
    %p363 = por %p361, %p362
    %s364 = ssub.s32 %s41, %s48
    %p365 = scmp.eq.s32.totalorder %s364, 0
    %s367 = sadd.s32 %s366, 1
    %s368 = scalar_select %p365, %s366, %s367
    %p371 = pneg %p365
    %p372 = scmp.eq.s32.totalorder %s33, 27
    %p373 = por %p371, %p372
    %p374 = scmp.ne.s32.totalorder %s366, %s369
    %p375 = scmp.eq.s32.totalorder %s33, 0
    %p376 = por %p374, %p375
    %p377 = scmp.ne.s32.totalorder %s366, %s369
    %p378 = scmp.eq.s32.totalorder %s38, 27
    %p379 = por %p377, %p378
    %p380 = scmp.ne.s32.totalorder %s369, %s370
    %p381 = scmp.eq.s32.totalorder %s38, 0
    %p382 = por %p380, %p381
    %p383 = scmp.ne.s32.totalorder %s369, %s370
    %p384 = scmp.eq.s32.totalorder %s39, 27
    %p385 = por %p383, %p384
    %p387 = scmp.ne.s32.totalorder %s370, %s386
    %p388 = scmp.eq.s32.totalorder %s39, 0
    %p389 = por %p387, %p388
    %s390 = ssub.s32 %s41, %s48
    %p391 = scmp.eq.s32.totalorder %s390, 0
    %s393 = sadd.s32 %s392, 1
    %s394 = scalar_select %p391, %s392, %s393
    %p397 = pneg %p391
    %p398 = scmp.eq.s32.totalorder %s33, 27
    %p399 = por %p397, %p398
    %p400 = scmp.ne.s32.totalorder %s392, %s395
    %p401 = scmp.eq.s32.totalorder %s33, 0
    %p402 = por %p400, %p401
    %p403 = scmp.ne.s32.totalorder %s392, %s395
    %p404 = scmp.eq.s32.totalorder %s38, 27
    %p405 = por %p403, %p404
    %p406 = scmp.ne.s32.totalorder %s395, %s396
    %p407 = scmp.eq.s32.totalorder %s38, 0
    %p408 = por %p406, %p407
    %p409 = scmp.ne.s32.totalorder %s395, %s396
    %p410 = scmp.eq.s32.totalorder %s39, 27
    %p411 = por %p409, %p410
    %p413 = scmp.ne.s32.totalorder %s396, %s412
    %p414 = scmp.eq.s32.totalorder %s39, 0
    %p415 = por %p413, %p414
    %s416 = ssub.s32 %s41, %s48
    %p417 = scmp.eq.s32.totalorder %s416, 0
    %s419 = sadd.s32 %s418, 1
    %s420 = scalar_select %p417, %s418, %s419
    %p423 = pneg %p417
    %p424 = scmp.eq.s32.totalorder %s33, 27
    %p425 = por %p423, %p424
    %p426 = scmp.ne.s32.totalorder %s418, %s421
    %p427 = scmp.eq.s32.totalorder %s33, 0
    %p428 = por %p426, %p427
    %p429 = scmp.ne.s32.totalorder %s418, %s421
    %p430 = scmp.eq.s32.totalorder %s38, 27
    %p431 = por %p429, %p430
    %p432 = scmp.ne.s32.totalorder %s421, %s422
    %p433 = scmp.eq.s32.totalorder %s38, 0
    %p434 = por %p432, %p433
    %p435 = scmp.ne.s32.totalorder %s421, %s422
    %p436 = scmp.eq.s32.totalorder %s39, 27
    %p437 = por %p435, %p436
    %p439 = scmp.ne.s32.totalorder %s422, %s438
    %p440 = scmp.eq.s32.totalorder %s39, 0
    %p441 = por %p439, %p440
    %s442 = ssub.s32 %s41, %s48
    %p443 = scmp.eq.s32.totalorder %s442, 0
    %s445 = sadd.s32 %s444, 1
    %s446 = scalar_select %p443, %s444, %s445
    %p449 = pneg %p443
    %p450 = scmp.eq.s32.totalorder %s33, 27
    %p451 = por %p449, %p450
    %p452 = scmp.ne.s32.totalorder %s444, %s447
    %p453 = scmp.eq.s32.totalorder %s33, 0
    %p454 = por %p452, %p453
    %p455 = scmp.ne.s32.totalorder %s444, %s447
    %p456 = scmp.eq.s32.totalorder %s38, 27
    %p457 = por %p455, %p456
    %p458 = scmp.ne.s32.totalorder %s447, %s448
    %p459 = scmp.eq.s32.totalorder %s38, 0
    %p460 = por %p458, %p459
    %p461 = scmp.ne.s32.totalorder %s447, %s448
    %p462 = scmp.eq.s32.totalorder %s39, 27
    %p463 = por %p461, %p462
    %p465 = scmp.ne.s32.totalorder %s448, %s464
    %p466 = scmp.eq.s32.totalorder %s39, 0
    %p467 = por %p465, %p466
    %s469 = sadd.s32 %s468, 1
    %p472 = scmp.eq.s32.totalorder %s33, 27
    %p473 = scmp.ne.s32.totalorder %s468, %s470
    %p474 = scmp.eq.s32.totalorder %s33, 0
    %p475 = por %p473, %p474
    %p476 = scmp.ne.s32.totalorder %s468, %s470
    %p477 = scmp.eq.s32.totalorder %s38, 27
    %p478 = por %p476, %p477
    %p479 = scmp.ne.s32.totalorder %s470, %s471
    %p480 = scmp.eq.s32.totalorder %s38, 0
    %p481 = por %p479, %p480
    %p482 = scmp.ne.s32.totalorder %s470, %s471
    %p483 = scmp.eq.s32.totalorder %s39, 27
    %p484 = por %p482, %p483
    %p486 = scmp.ne.s32.totalorder %s471, %s485
    %p487 = scmp.eq.s32.totalorder %s39, 0
    %p488 = por %p486, %p487
    %s490 = sadd.s32 %s489, 1
    %p493 = scmp.eq.s32.totalorder %s33, 27
    %p494 = scmp.ne.s32.totalorder %s489, %s491
    %p495 = scmp.eq.s32.totalorder %s33, 0
    %p496 = por %p494, %p495
    %p497 = scmp.ne.s32.totalorder %s489, %s491
    %p498 = scmp.eq.s32.totalorder %s38, 27
    %p499 = por %p497, %p498
    %p500 = scmp.ne.s32.totalorder %s491, %s492
    %p501 = scmp.eq.s32.totalorder %s38, 0
    %p502 = por %p500, %p501
    %p503 = scmp.ne.s32.totalorder %s491, %s492
    %p504 = scmp.eq.s32.totalorder %s39, 27
    %p505 = por %p503, %p504
    %p507 = scmp.ne.s32.totalorder %s492, %s506
    %p508 = scmp.eq.s32.totalorder %s39, 0
    %p509 = por %p507, %p508
    %s510 = ssub.s32 %s40, %s52
    %p511 = scmp.eq.s32.totalorder %s510, 0
    %s513 = sadd.s32 %s512, 1
    %s514 = scalar_select %p511, %s512, %s513
    %p517 = pneg %p511
    %p518 = scmp.eq.s32.totalorder %s33, 27
    %p519 = por %p517, %p518
    %p520 = scmp.ne.s32.totalorder %s512, %s515
    %p521 = scmp.eq.s32.totalorder %s33, 0
    %p522 = por %p520, %p521
    %p523 = scmp.ne.s32.totalorder %s512, %s515
    %p524 = scmp.eq.s32.totalorder %s38, 27
    %p525 = por %p523, %p524
    %p526 = scmp.ne.s32.totalorder %s515, %s516
    %p527 = scmp.eq.s32.totalorder %s38, 0
    %p528 = por %p526, %p527
    %p529 = scmp.ne.s32.totalorder %s515, %s516
    %p530 = scmp.eq.s32.totalorder %s39, 27
    %p531 = por %p529, %p530
    %p533 = scmp.ne.s32.totalorder %s516, %s532
    %p534 = scmp.eq.s32.totalorder %s39, 0
    %p535 = por %p533, %p534
    %p536 = scmp.le.s32.totalorder 1, %s33
    %p537 = scmp.lt.s32.totalorder %s33, 29
    %p538 = pnand %p536, %p537
    %p539 = pneg %p538
    // Predicated region
    $region9: #{nes_forward.1} parent=5 // pred_check
      _
    $region10: #{nes_forward.1} parent=5 // pred_check_branch
      %541 = sbr.rel (%p538) target = $region12
    $region11: #{nes_forward.1} parent=5 // pred_region
      %s542 = ssub.s32 %s33, 1
      // Predicated region
      $region13: #{nes_forward.1} parent=11 // pred_check
        %p543 = pneg %p148
      $region14: #{nes_forward.1} parent=11 // pred_check_branch
        %545 = sbr.rel (%p543) target = $region16
      $region15: #{nes_forward.1} parent=11 // pred_region
        _
      $region16: #{nes_forward.1} parent=11 // pred_fallthru
        _
      // Predicated region
      $region17: #{nes_forward.1} parent=11 // pred_check
        %p546 = pneg %p481
      $region18: #{nes_forward.1} parent=11 // pred_check_branch
        %548 = sbr.rel (%p546) target = $region20
      $region19: #{nes_forward.1} parent=11 // pred_region
        _
      $region20: #{nes_forward.1} parent=11 // pred_fallthru
        _
      // Predicated region
      $region21: #{nes_forward.1} parent=11 // pred_check
        %p549 = pneg %p502
      $region22: #{nes_forward.1} parent=11 // pred_check_branch
        %551 = sbr.rel (%p549) target = $region24
      $region23: #{nes_forward.1} parent=11 // pred_region
        _
      $region24: #{nes_forward.1} parent=11 // pred_fallthru
        _
    $region12: #{nes_forward.1} parent=5 // pred_fallthru
      _
    %p552 = scmp.lt.s32.totalorder %s33, 28
    // Predicated region
    $region25: #{nes_forward.1} parent=5 // pred_check
      %p553 = pneg %p552
    $region26: #{nes_forward.1} parent=5 // pred_check_branch
      %555 = sbr.rel (%p553) target = $region28
    $region27: #{nes_forward.1} parent=5 // pred_region
      // Predicated region
      $region29: #{nes_forward.1} parent=27 // pred_check
        %p556 = pneg %p65
      $region30: #{nes_forward.1} parent=27 // pred_check_branch
        %558 = sbr.rel (%p556) target = $region32
      $region31: #{nes_forward.1} parent=27 // pred_region
        %p559 = scmp.lt.s32.totalorder %s40, 1
        %s560 = scalar_select %p559, %s40, 1
        %s561 = smul.addr %s560, 8
        %s562 = scalar_lea.vmem %s1, %s561
      $region32: #{nes_forward.1} parent=27 // pred_fallthru
        _
      // Predicated region
      $region33: #{nes_forward.1} parent=27 // pred_check
        %p563 = pneg %p93
      $region34: #{nes_forward.1} parent=27 // pred_check_branch
        %565 = sbr.rel (%p563) target = $region36
      $region35: #{nes_forward.1} parent=27 // pred_region
        %s566 = sld [smem:[#allocation4 + %s41]]
        %p567 = scmp.lt.s32.totalorder %s566, 2
        %s568 = scalar_select %p567, %s566, 2
        %s569 = smul.addr %s568, 8
        %s570 = scalar_lea.vmem %s2, %s569
        %s571 = sld [smem:[#allocation4 + %s41]]
      $region36: #{nes_forward.1} parent=27 // pred_fallthru
        _
      // Predicated region
      $region37: #{nes_forward.1} parent=27 // pred_check
        %p572 = pneg %p121
      $region38: #{nes_forward.1} parent=27 // pred_check_branch
        %574 = sbr.rel (%p572) target = $region40
      $region39: #{nes_forward.1} parent=27 // pred_region
        %s575 = sld [smem:[#allocation4 + %s41]]
        %p576 = scmp.lt.s32.totalorder %s575, 2
        %s577 = scalar_select %p576, %s575, 2
        %s578 = smul.addr %s577, 8
        %s579 = scalar_lea.vmem %s3, %s578
        %s580 = sld [smem:[#allocation4 + %s41]]
      $region40: #{nes_forward.1} parent=27 // pred_fallthru
        _
      // Predicated region
      $region41: #{nes_forward.1} parent=27 // pred_check
        %p581 = pneg %p168
      $region42: #{nes_forward.1} parent=27 // pred_check_branch
        %583 = sbr.rel (%p581) target = $region44
      $region43: #{nes_forward.1} parent=27 // pred_region
        %p584 = scmp.lt.s32.totalorder %s41, 13
        %s585 = scalar_select %p584, %s41, 13
        %s586 = scalar_lea.vmem %s5, %s585
      $region44: #{nes_forward.1} parent=27 // pred_fallthru
        _
      // Predicated region
      $region45: #{nes_forward.1} parent=27 // pred_check
        %p587 = pneg %p194
      $region46: #{nes_forward.1} parent=27 // pred_check_branch
        %589 = sbr.rel (%p587) target = $region48
      $region47: #{nes_forward.1} parent=27 // pred_region
        %p590 = scmp.lt.s32.totalorder %s41, 13
        %s591 = scalar_select %p590, %s41, 13
        %s592 = scalar_lea.vmem %s6, %s591
      $region48: #{nes_forward.1} parent=27 // pred_fallthru
        _
      // Predicated region
      $region49: #{nes_forward.1} parent=27 // pred_check
        %p593 = pneg %p220
      $region50: #{nes_forward.1} parent=27 // pred_check_branch
        %595 = sbr.rel (%p593) target = $region52
      $region51: #{nes_forward.1} parent=27 // pred_region
        %p596 = scmp.lt.s32.totalorder %s41, 13
        %s597 = scalar_select %p596, %s41, 13
        %s598 = smul.addr %s597, 48
        %s599 = smul.addr %s598, 4
        %s600 = scalar_lea.vmem %s7, %s599
      $region52: #{nes_forward.1} parent=27 // pred_fallthru
        _
      // Predicated region
      $region53: #{nes_forward.1} parent=27 // pred_check
        %p601 = pneg %p246
      $region54: #{nes_forward.1} parent=27 // pred_check_branch
        %603 = sbr.rel (%p601) target = $region56
      $region55: #{nes_forward.1} parent=27 // pred_region
        %p604 = scmp.lt.s32.totalorder %s41, 13
        %s605 = scalar_select %p604, %s41, 13
        %s606 = smul.addr %s605, 12
        %s607 = scalar_lea.vmem %s8, %s606
      $region56: #{nes_forward.1} parent=27 // pred_fallthru
        _
      // Predicated region
      $region57: #{nes_forward.1} parent=27 // pred_check
        %p608 = pneg %p272
      $region58: #{nes_forward.1} parent=27 // pred_check_branch
        %610 = sbr.rel (%p608) target = $region60
      $region59: #{nes_forward.1} parent=27 // pred_region
        %p611 = scmp.lt.s32.totalorder %s41, 13
        %s612 = scalar_select %p611, %s41, 13
        %s613 = smul.addr %s612, 4
        %s614 = smul.addr %s613, 4
        %s615 = scalar_lea.vmem %s9, %s614
      $region60: #{nes_forward.1} parent=27 // pred_fallthru
        _
      // Predicated region
      $region61: #{nes_forward.1} parent=27 // pred_check
        %p616 = pneg %p298
      $region62: #{nes_forward.1} parent=27 // pred_check_branch
        %618 = sbr.rel (%p616) target = $region64
      $region63: #{nes_forward.1} parent=27 // pred_region
        %p619 = scmp.lt.s32.totalorder %s41, 13
        %s620 = scalar_select %p619, %s41, 13
        %s621 = scalar_lea.vmem %s10, %s620
      $region64: #{nes_forward.1} parent=27 // pred_fallthru
        _
      // Predicated region
      $region65: #{nes_forward.1} parent=27 // pred_check
        %p622 = pneg %p324
      $region66: #{nes_forward.1} parent=27 // pred_check_branch
        %624 = sbr.rel (%p622) target = $region68
      $region67: #{nes_forward.1} parent=27 // pred_region
        %p625 = scmp.lt.s32.totalorder %s41, 13
        %s626 = scalar_select %p625, %s41, 13
        %s627 = scalar_lea.vmem %s11, %s626
      $region68: #{nes_forward.1} parent=27 // pred_fallthru
        _
      // Predicated region
      $region69: #{nes_forward.1} parent=27 // pred_check
        %p628 = pneg %p350
      $region70: #{nes_forward.1} parent=27 // pred_check_branch
        %630 = sbr.rel (%p628) target = $region72
      $region71: #{nes_forward.1} parent=27 // pred_region
        %p631 = scmp.lt.s32.totalorder %s41, 13
        %s632 = scalar_select %p631, %s41, 13
        %s633 = scalar_lea.vmem %s12, %s632
      $region72: #{nes_forward.1} parent=27 // pred_fallthru
        _
      // Predicated region
      $region73: #{nes_forward.1} parent=27 // pred_check
        %p634 = pneg %p376
      $region74: #{nes_forward.1} parent=27 // pred_check_branch
        %636 = sbr.rel (%p634) target = $region76
      $region75: #{nes_forward.1} parent=27 // pred_region
        %p637 = scmp.lt.s32.totalorder %s41, 13
        %s638 = scalar_select %p637, %s41, 13
        %s639 = smul.addr %s638, 4
        %s640 = smul.addr %s639, 4
        %s641 = scalar_lea.vmem %s13, %s640
      $region76: #{nes_forward.1} parent=27 // pred_fallthru
        _
      // Predicated region
      $region77: #{nes_forward.1} parent=27 // pred_check
        %p642 = pneg %p402
      $region78: #{nes_forward.1} parent=27 // pred_check_branch
        %644 = sbr.rel (%p642) target = $region80
      $region79: #{nes_forward.1} parent=27 // pred_region
        %p645 = scmp.lt.s32.totalorder %s41, 13
        %s646 = scalar_select %p645, %s41, 13
        %s647 = scalar_lea.vmem %s14, %s646
      $region80: #{nes_forward.1} parent=27 // pred_fallthru
        _
      // Predicated region
      $region81: #{nes_forward.1} parent=27 // pred_check
        %p648 = pneg %p428
      $region82: #{nes_forward.1} parent=27 // pred_check_branch
        %650 = sbr.rel (%p648) target = $region84
      $region83: #{nes_forward.1} parent=27 // pred_region
        %p651 = scmp.lt.s32.totalorder %s41, 13
        %s652 = scalar_select %p651, %s41, 13
        %s653 = smul.addr %s652, 16
        %s654 = smul.addr %s653, 4
        %s655 = scalar_lea.vmem %s15, %s654
      $region84: #{nes_forward.1} parent=27 // pred_fallthru
        _
      // Predicated region
      $region85: #{nes_forward.1} parent=27 // pred_check
        %p656 = pneg %p454
      $region86: #{nes_forward.1} parent=27 // pred_check_branch
        %658 = sbr.rel (%p656) target = $region88
      $region87: #{nes_forward.1} parent=27 // pred_region
        %p659 = scmp.lt.s32.totalorder %s41, 13
        %s660 = scalar_select %p659, %s41, 13
        %s661 = scalar_lea.vmem %s16, %s660
      $region88: #{nes_forward.1} parent=27 // pred_fallthru
        _
    $region28: #{nes_forward.1} parent=5 // pred_fallthru
      _
    %p662 = scmp.le.s32.totalorder 1, %s33
    %p663 = scmp.lt.s32.totalorder %s33, 29
    %p664 = pnand %p662, %p663
    %p665 = pneg %p664
    // Predicated region
    $region89: #{nes_forward.1} parent=5 // pred_check
      _
    $region90: #{nes_forward.1} parent=5 // pred_check_branch
      %667 = sbr.rel (%p664) target = $region92
    $region91: #{nes_forward.1} parent=5 // pred_region
      %s668 = ssub.s32 %s33, 1
      %p669 = scmp.lt.s32.totalorder %s42, 1
      %s670 = scalar_select %p669, %s42, 1
      %s671 = smul.addr %s670, 8
      %s672 = scalar_lea.vmem %s1, %s671
      %p673 = pneg %p71
      %p674 = pneg %p68
      %s675 = sld [smem:[#allocation4 + %s43]]
      %p676 = scmp.lt.s32.totalorder %s675, 2
      %s677 = scalar_select %p676, %s675, 2
      %s678 = smul.addr %s677, 8
      %s679 = scalar_lea.vmem %s2, %s678
      %p680 = pneg %p99
      %p681 = pneg %p96
      %s682 = sld [smem:[#allocation4 + %s43]]
      %p683 = scmp.lt.s32.totalorder %s682, 2
      %s684 = scalar_select %p683, %s682, 2
      %s685 = smul.addr %s684, 8
      %s686 = scalar_lea.vmem %s3, %s685
      %p687 = pneg %p127
      %p688 = pneg %p124
      %p689 = pneg %p148
      %p690 = pneg %p145
      %p691 = scmp.lt.s32.totalorder %s43, 13
      %s692 = scalar_select %p691, %s43, 13
      %s693 = scalar_lea.vmem %s5, %s692
      %p694 = pneg %p174
      %p695 = pneg %p171
      %p696 = scmp.lt.s32.totalorder %s43, 13
      %s697 = scalar_select %p696, %s43, 13
      %s698 = scalar_lea.vmem %s6, %s697
      %p699 = pneg %p200
      %p700 = pneg %p197
      %p701 = scmp.lt.s32.totalorder %s43, 13
      %s702 = scalar_select %p701, %s43, 13
      %s703 = smul.addr %s702, 48
      %s704 = smul.addr %s703, 4
      %s705 = scalar_lea.vmem %s7, %s704
      %p706 = pneg %p226
      %p707 = pneg %p223
      %p708 = scmp.lt.s32.totalorder %s43, 13
      %s709 = scalar_select %p708, %s43, 13
      %s710 = smul.addr %s709, 12
      %s711 = scalar_lea.vmem %s8, %s710
      %p712 = pneg %p252
      %p713 = pneg %p249
      %p714 = scmp.lt.s32.totalorder %s43, 13
      %s715 = scalar_select %p714, %s43, 13
      %s716 = smul.addr %s715, 4
      %s717 = smul.addr %s716, 4
      %s718 = scalar_lea.vmem %s9, %s717
      %p719 = pneg %p278
      %p720 = pneg %p275
      %p721 = scmp.lt.s32.totalorder %s43, 13
      %s722 = scalar_select %p721, %s43, 13
      %s723 = scalar_lea.vmem %s10, %s722
      %p724 = pneg %p304
      %p725 = pneg %p301
      %p726 = scmp.lt.s32.totalorder %s43, 13
      %s727 = scalar_select %p726, %s43, 13
      %s728 = scalar_lea.vmem %s11, %s727
      %p729 = pneg %p330
      %p730 = pneg %p327
      %p731 = scmp.lt.s32.totalorder %s43, 13
      %s732 = scalar_select %p731, %s43, 13
      %s733 = scalar_lea.vmem %s12, %s732
      %p734 = pneg %p356
      %p735 = pneg %p353
      %p736 = scmp.lt.s32.totalorder %s43, 13
      %s737 = scalar_select %p736, %s43, 13
      %s738 = smul.addr %s737, 4
      %s739 = smul.addr %s738, 4
      %s740 = scalar_lea.vmem %s13, %s739
      %p741 = pneg %p382
      %p742 = pneg %p379
      %p743 = scmp.lt.s32.totalorder %s43, 13
      %s744 = scalar_select %p743, %s43, 13
      %s745 = scalar_lea.vmem %s14, %s744
      %p746 = pneg %p408
      %p747 = pneg %p405
      %p748 = scmp.lt.s32.totalorder %s43, 13
      %s749 = scalar_select %p748, %s43, 13
      %s750 = smul.addr %s749, 16
      %s751 = smul.addr %s750, 4
      %s752 = scalar_lea.vmem %s15, %s751
      %p753 = pneg %p434
      %p754 = pneg %p431
      %p755 = scmp.lt.s32.totalorder %s43, 13
      %s756 = scalar_select %p755, %s43, 13
      %s757 = scalar_lea.vmem %s16, %s756
      %p758 = pneg %p460
      %p759 = pneg %p457
      %p760 = pneg %p481
      %p761 = pneg %p478
      %p762 = pneg %p502
      %p763 = pneg %p499
      %p764 = pneg %p528
      %p765 = pneg %p525
      %p766 = scmp.lt.s32.totalorder %s42, 1
      %s767 = scalar_select %p766, %s42, 1
      %s768 = smul.addr %s767, 2
      %s769 = scalar_lea.vmem %s19, %s768
      %p770 = scmp.lt.s32.totalorder %s42, 1
      %s771 = scalar_select %p770, %s42, 1
      %s772 = smul.addr %s771, 8
      %s773 = scalar_lea.vmem %s1, %s772
      %s774 = sld [smem:[#allocation4 + %s43]]
      %p775 = scmp.lt.s32.totalorder %s774, 2
      %s776 = scalar_select %p775, %s774, 2
      %s777 = smul.addr %s776, 8
      %s778 = scalar_lea.vmem %s2, %s777
      %s779 = sld [smem:[#allocation4 + %s43]]
      %s780 = sld [smem:[#allocation4 + %s43]]
      %p781 = scmp.lt.s32.totalorder %s780, 2
      %s782 = scalar_select %p781, %s780, 2
      %s783 = smul.addr %s782, 8
      %s784 = scalar_lea.vmem %s3, %s783
      %s785 = sld [smem:[#allocation4 + %s43]]
      %p786 = scmp.lt.s32.totalorder %s43, 13
      %s787 = scalar_select %p786, %s43, 13
      %s788 = scalar_lea.vmem %s5, %s787
      %p789 = scmp.lt.s32.totalorder %s43, 13
      %s790 = scalar_select %p789, %s43, 13
      %s791 = scalar_lea.vmem %s6, %s790
      %p792 = scmp.lt.s32.totalorder %s43, 13
      %s793 = scalar_select %p792, %s43, 13
      %s794 = smul.addr %s793, 48
      %s795 = smul.addr %s794, 4
      %s796 = scalar_lea.vmem %s7, %s795
      %p797 = scmp.lt.s32.totalorder %s43, 13
      %s798 = scalar_select %p797, %s43, 13
      %s799 = smul.addr %s798, 12
      %s800 = scalar_lea.vmem %s8, %s799
      %p801 = scmp.lt.s32.totalorder %s43, 13
      %s802 = scalar_select %p801, %s43, 13
      %s803 = smul.addr %s802, 4
      %s804 = smul.addr %s803, 4
      %s805 = scalar_lea.vmem %s9, %s804
      %p806 = scmp.lt.s32.totalorder %s43, 13
      %s807 = scalar_select %p806, %s43, 13
      %s808 = scalar_lea.vmem %s10, %s807
      %p809 = scmp.lt.s32.totalorder %s43, 13
      %s810 = scalar_select %p809, %s43, 13
      %s811 = scalar_lea.vmem %s11, %s810
      %p812 = scmp.lt.s32.totalorder %s43, 13
      %s813 = scalar_select %p812, %s43, 13
      %s814 = scalar_lea.vmem %s12, %s813
      %p815 = scmp.lt.s32.totalorder %s43, 13
      %s816 = scalar_select %p815, %s43, 13
      %s817 = smul.addr %s816, 4
      %s818 = smul.addr %s817, 4
      %s819 = scalar_lea.vmem %s13, %s818
      %p820 = scmp.lt.s32.totalorder %s43, 13
      %s821 = scalar_select %p820, %s43, 13
      %s822 = scalar_lea.vmem %s14, %s821
      %p823 = scmp.lt.s32.totalorder %s43, 13
      %s824 = scalar_select %p823, %s43, 13
      %s825 = smul.addr %s824, 16
      %s826 = smul.addr %s825, 4
      %s827 = scalar_lea.vmem %s15, %s826
      %p828 = scmp.lt.s32.totalorder %s43, 13
      %s829 = scalar_select %p828, %s43, 13
      %s830 = scalar_lea.vmem %s16, %s829
      %p831 = scmp.lt.s32.totalorder %s42, 1
      %s832 = scalar_select %p831, %s42, 1
      %s833 = smul.addr %s832, 2
      %s834 = scalar_lea.vmem %s19, %s833
      %p836 = scmp.eq.s32.totalorder %s43, 0
      // Predicated region
      $region93: #{nes_forward.1} parent=91 // pred_check
        %p837 = pneg %p836
      $region94: #{nes_forward.1} parent=91 // pred_check_branch
        %839 = sbr.rel (%p837) target = $region96
      $region95: #{nes_forward.1} parent=91 // pred_region
        %v840 = vld [vmem:[%s773] sm:$0xff]
        %vm841 = vcmask 261120
        %842 = vst.msk [vmem:[#allocation2] sm:$0xff] %vm841, %v840
      $region96: #{nes_forward.1} parent=91 // pred_fallthru
        _
      %v843 = vld [vmem:[#allocation2] sm:$0xff]
      %v844 = vld [vmem:[%s778] sm:$0xff]
      %v845 = vld [vmem:[%s784] sm:$0xff]
      %v846 = vld [vmem:[%s788] sm:$0x1]
      %v847 = vld [vmem:[%s791] sm:$0x1]
      %vm848 = vcmask 261120
      %v849 = vsel %vm848, %v843, 0.0
      %850 = vadd.xlane.f32.xlu0 %v849
      %v851 = vpop.xlane.xlu0 %850
      %v852 = vrcp.pop 32.0
      %v853 = vmul.f32 32.0, %v852
      %v854 = vsub.f32 1.0, %v853
      %v855 = vmul.f32 %v852, %v854
      %v856 = vadd.f32 %v852, %v855
      %vm857 = vweird.f32 %v852
      %v858 = vsel %vm857, %v852, %v856
      %v859 = vmul.f32 %v851, %v858
      %v860 = vsub.f32 %v843, %v859
      %v861 = vmul.f32 %v860, %v860
      %v862 = vsel %vm848, %v861, 0.0
      %863 = vadd.xlane.f32.xlu0 %v862
      %v864 = vpop.xlane.xlu0 %863
      %v865 = vmul.f32 %v864, %v858
      %v866 = vadd.f32 %v865, 1e-05
      %v867 = vrsqrt.pop %v866
      %v868 = vmul.f32 %v867, %v866
      %v869 = vmul.f32 %v868, %v867
      %v870 = vmul.f32 0.5, %v869
      %v871 = vsub.f32 1.5, %v870
      %v872 = vmul.f32 %v867, %v871
      %vm873 = vweird.f32 %v866
      %vm874 = vweird.f32 %v867
      %vm875 = vmor %vm873, %vm874
      %v876 = vsel %vm875, %v867, %v872
      %v877 = vmul.f32 %v860, %v876
      %v879 = vperm.slane %v846, 0
      %v881 = vmul.f32 %v877, %v879
      %v883 = vperm.slane %v847, 0
      %v885 = vadd.f32 %v881, %v883
      %v886 = vpack.c.bf16 %v885, %v885
      %v887 = vld [vmem:[%s796] sm:$0xf]
      %v888 = vld [vmem:[%s796 + $0x4] sm:$0xf]
      %v889 = vld [vmem:[%s796 + $0x8] sm:$0xf]
      %v890 = vld [vmem:[%s796 + $0xc] sm:$0xf]
      %v891 = vld [vmem:[%s796 + $0x10] sm:$0xf]
      %v892 = vld [vmem:[%s796 + $0x14] sm:$0xf]
      %v893 = vld [vmem:[%s796 + $0x18] sm:$0xf]
      %v894 = vld [vmem:[%s796 + $0x1c] sm:$0xf]
      %v895 = vld [vmem:[%s796 + $0x20] sm:$0xf]
      %v896 = vld [vmem:[%s796 + $0x24] sm:$0xf]
      %v897 = vld [vmem:[%s796 + $0x28] sm:$0xf]
      %v898 = vld [vmem:[%s796 + $0x2c] sm:$0xf]
      %v899 = vld [vmem:[%s796 + $0x30] sm:$0xf]
      %v900 = vld [vmem:[%s796 + $0x34] sm:$0xf]
      %v901 = vld [vmem:[%s796 + $0x38] sm:$0xf]
      %v902 = vld [vmem:[%s796 + $0x3c] sm:$0xf]
      %v903 = vld [vmem:[%s796 + $0x40] sm:$0xf]
      %v904 = vld [vmem:[%s796 + $0x44] sm:$0xf]
      %v905 = vld [vmem:[%s796 + $0x48] sm:$0xf]
      %v906 = vld [vmem:[%s796 + $0x4c] sm:$0xf]
      %v907 = vld [vmem:[%s796 + $0x50] sm:$0xf]
      %v908 = vld [vmem:[%s796 + $0x54] sm:$0xf]
      %v909 = vld [vmem:[%s796 + $0x58] sm:$0xf]
      %v910 = vld [vmem:[%s796 + $0x5c] sm:$0xf]
      %v911 = vld [vmem:[%s796 + $0x60] sm:$0xf]
      %v912 = vld [vmem:[%s796 + $0x64] sm:$0xf]
      %v913 = vld [vmem:[%s796 + $0x68] sm:$0xf]
      %v914 = vld [vmem:[%s796 + $0x6c] sm:$0xf]
      %v915 = vld [vmem:[%s796 + $0x70] sm:$0xf]
      %v916 = vld [vmem:[%s796 + $0x74] sm:$0xf]
      %v917 = vld [vmem:[%s796 + $0x78] sm:$0xf]
      %v918 = vld [vmem:[%s796 + $0x7c] sm:$0xf]
      %v919 = vld [vmem:[%s796 + $0x80] sm:$0xf]
      %v920 = vld [vmem:[%s796 + $0x84] sm:$0xf]
      %v921 = vld [vmem:[%s796 + $0x88] sm:$0xf]
      %v922 = vld [vmem:[%s796 + $0x8c] sm:$0xf]
      %v923 = vld [vmem:[%s796 + $0x90] sm:$0xf]
      %v924 = vld [vmem:[%s796 + $0x94] sm:$0xf]
      %v925 = vld [vmem:[%s796 + $0x98] sm:$0xf]
      %v926 = vld [vmem:[%s796 + $0x9c] sm:$0xf]
      %v927 = vld [vmem:[%s796 + $0xa0] sm:$0xf]
      %v928 = vld [vmem:[%s796 + $0xa4] sm:$0xf]
      %v929 = vld [vmem:[%s796 + $0xa8] sm:$0xf]
      %v930 = vld [vmem:[%s796 + $0xac] sm:$0xf]
      %v931 = vld [vmem:[%s796 + $0xb0] sm:$0xf]
      %v932 = vld [vmem:[%s796 + $0xb4] sm:$0xf]
      %v933 = vld [vmem:[%s796 + $0xb8] sm:$0xf]
      %v934 = vld [vmem:[%s796 + $0xbc] sm:$0xf]
      %v935 = vld [vmem:[%s800] sm:$0x1]
      %v936 = vld [vmem:[%s800 + $0x1] sm:$0x1]
      %v937 = vld [vmem:[%s800 + $0x2] sm:$0x1]
      %v938 = vld [vmem:[%s800 + $0x3] sm:$0x1]
      %v939 = vld [vmem:[%s800 + $0x4] sm:$0x1]
      %v940 = vld [vmem:[%s800 + $0x5] sm:$0x1]
      %v941 = vld [vmem:[%s800 + $0x6] sm:$0x1]
      %v942 = vld [vmem:[%s800 + $0x7] sm:$0x1]
      %v943 = vld [vmem:[%s800 + $0x8] sm:$0x1]
      %v944 = vld [vmem:[%s800 + $0x9] sm:$0x1]
      %v945 = vld [vmem:[%s800 + $0xa] sm:$0x1]
      %v946 = vld [vmem:[%s800 + $0xb] sm:$0x1]
      %v959 = vperm.slane %v935, 0
      %v960 = vperm.slane %v936, 0
      %v961 = vperm.slane %v937, 0
      %v962 = vperm.slane %v938, 0
      %v963 = vperm.slane %v939, 0
      %v964 = vperm.slane %v940, 0
      %v965 = vperm.slane %v941, 0
      %v966 = vperm.slane %v942, 0
      %v967 = vperm.slane %v943, 0
      %v968 = vperm.slane %v944, 0
      %v969 = vperm.slane %v945, 0
      %v970 = vperm.slane %v946, 0
      %v987 = vunpack.c.l.b16 %v887
      %v988 = vunpack.c.l.b16 %v888
      %v989 = vunpack.c.l.b16 %v889
      %v990 = vunpack.c.l.b16 %v890
      %v991 = vpack.c.b16 %v988, %v987
      %v992 = vpack.c.b16 %v990, %v989
      %v996 = vsel %vm848, %v886, 0
      %998 = vmatpush.bf16.msra.mxu0 0
      %999 = vmatpush.bf16.msra.mxu0 0
      %1000 = vmatpush.bf16.msra.mxu0 0
      %1001 = vmatpush.bf16.msra.mxu0 0
      %1002 = vmatpush.bf16.msra.mxu0 0
      %1003 = vmatpush.bf16.msra.mxu0 0
      %1004 = vmatpush.bf16.msra.mxu0 %v992
      %1005 = vmatpush.bf16.msra.mxu0 %v991
      %1006 = vmatmul.bf16.gmra.mxu0 %v996
      %v1007 = vpop.f32.mrf.mxu0
      %v1008 = vadd.f32 %v959, %v1007
      %v1009 = vpop.f32.mrf.mxu0
      %1010 = vdwg.mxu0
      %v1015 = vunpack.c.l.b16 %v891
      %v1016 = vunpack.c.l.b16 %v892
      %v1017 = vunpack.c.l.b16 %v893
      %v1018 = vunpack.c.l.b16 %v894
      %v1019 = vpack.c.b16 %v1016, %v1015
      %v1020 = vpack.c.b16 %v1018, %v1017
      %1023 = vmatpush.bf16.msra.mxu0 0
      %1024 = vmatpush.bf16.msra.mxu0 0
      %1025 = vmatpush.bf16.msra.mxu0 0
      %1026 = vmatpush.bf16.msra.mxu0 0
      %1027 = vmatpush.bf16.msra.mxu0 0
      %1028 = vmatpush.bf16.msra.mxu0 0
      %1029 = vmatpush.bf16.msra.mxu0 %v1020
      %1030 = vmatpush.bf16.msra.mxu0 %v1019
      %1031 = vmatmul.bf16.gmra.mxu0 %v996
      %v1032 = vpop.f32.mrf.mxu0
      %v1033 = vadd.f32 %v960, %v1032
      %v1034 = vpop.f32.mrf.mxu0
      %1035 = vdwg.mxu0
      %v1040 = vunpack.c.l.b16 %v895
      %v1041 = vunpack.c.l.b16 %v896
      %v1042 = vunpack.c.l.b16 %v897
      %v1043 = vunpack.c.l.b16 %v898
      %v1044 = vpack.c.b16 %v1041, %v1040
      %v1045 = vpack.c.b16 %v1043, %v1042
      %1048 = vmatpush.bf16.msra.mxu0 0
      %1049 = vmatpush.bf16.msra.mxu0 0
      %1050 = vmatpush.bf16.msra.mxu0 0
      %1051 = vmatpush.bf16.msra.mxu0 0
      %1052 = vmatpush.bf16.msra.mxu0 0
      %1053 = vmatpush.bf16.msra.mxu0 0
      %1054 = vmatpush.bf16.msra.mxu0 %v1045
      %1055 = vmatpush.bf16.msra.mxu0 %v1044
      %1056 = vmatmul.bf16.gmra.mxu0 %v996
      %v1057 = vpop.f32.mrf.mxu0
      %v1058 = vadd.f32 %v961, %v1057
      %v1059 = vpop.f32.mrf.mxu0
      %1060 = vdwg.mxu0
      %v1065 = vunpack.c.l.b16 %v899
      %v1066 = vunpack.c.l.b16 %v900
      %v1067 = vunpack.c.l.b16 %v901
      %v1068 = vunpack.c.l.b16 %v902
      %v1069 = vpack.c.b16 %v1066, %v1065
      %v1070 = vpack.c.b16 %v1068, %v1067
      %1073 = vmatpush.bf16.msra.mxu0 0
      %1074 = vmatpush.bf16.msra.mxu0 0
      %1075 = vmatpush.bf16.msra.mxu0 0
      %1076 = vmatpush.bf16.msra.mxu0 0
      %1077 = vmatpush.bf16.msra.mxu0 0
      %1078 = vmatpush.bf16.msra.mxu0 0
      %1079 = vmatpush.bf16.msra.mxu0 %v1070
      %1080 = vmatpush.bf16.msra.mxu0 %v1069
      %1081 = vmatmul.bf16.gmra.mxu0 %v996
      %v1082 = vpop.f32.mrf.mxu0
      %v1083 = vadd.f32 %v962, %v1082
      %v1084 = vpop.f32.mrf.mxu0
      %1085 = vdwg.mxu0
      %v1090 = vunpack.c.l.b16 %v903
      %v1091 = vunpack.c.l.b16 %v904
      %v1092 = vunpack.c.l.b16 %v905
      %v1093 = vunpack.c.l.b16 %v906
      %v1094 = vpack.c.b16 %v1091, %v1090
      %v1095 = vpack.c.b16 %v1093, %v1092
      %1098 = vmatpush.bf16.msra.mxu0 0
      %1099 = vmatpush.bf16.msra.mxu0 0
      %1100 = vmatpush.bf16.msra.mxu0 0
      %1101 = vmatpush.bf16.msra.mxu0 0
      %1102 = vmatpush.bf16.msra.mxu0 0
      %1103 = vmatpush.bf16.msra.mxu0 0
      %1104 = vmatpush.bf16.msra.mxu0 %v1095
      %1105 = vmatpush.bf16.msra.mxu0 %v1094
      %1106 = vmatmul.bf16.gmra.mxu0 %v996
      %v1107 = vpop.f32.mrf.mxu0
      %v1108 = vadd.f32 %v963, %v1107
      %v1109 = vpop.f32.mrf.mxu0
      %1110 = vdwg.mxu0
      %v1115 = vunpack.c.l.b16 %v907
      %v1116 = vunpack.c.l.b16 %v908
      %v1117 = vunpack.c.l.b16 %v909
      %v1118 = vunpack.c.l.b16 %v910
      %v1119 = vpack.c.b16 %v1116, %v1115
      %v1120 = vpack.c.b16 %v1118, %v1117
      %1123 = vmatpush.bf16.msra.mxu0 0
      %1124 = vmatpush.bf16.msra.mxu0 0
      %1125 = vmatpush.bf16.msra.mxu0 0
      %1126 = vmatpush.bf16.msra.mxu0 0
      %1127 = vmatpush.bf16.msra.mxu0 0
      %1128 = vmatpush.bf16.msra.mxu0 0
      %1129 = vmatpush.bf16.msra.mxu0 %v1120
      %1130 = vmatpush.bf16.msra.mxu0 %v1119
      %1131 = vmatmul.bf16.gmra.mxu0 %v996
      %v1132 = vpop.f32.mrf.mxu0
      %v1133 = vadd.f32 %v964, %v1132
      %v1134 = vpop.f32.mrf.mxu0
      %1135 = vdwg.mxu0
      %v1140 = vunpack.c.l.b16 %v911
      %v1141 = vunpack.c.l.b16 %v912
      %v1142 = vunpack.c.l.b16 %v913
      %v1143 = vunpack.c.l.b16 %v914
      %v1144 = vpack.c.b16 %v1141, %v1140
      %v1145 = vpack.c.b16 %v1143, %v1142
      %1148 = vmatpush.bf16.msra.mxu0 0
      %1149 = vmatpush.bf16.msra.mxu0 0
      %1150 = vmatpush.bf16.msra.mxu0 0
      %1151 = vmatpush.bf16.msra.mxu0 0
      %1152 = vmatpush.bf16.msra.mxu0 0
      %1153 = vmatpush.bf16.msra.mxu0 0
      %1154 = vmatpush.bf16.msra.mxu0 %v1145
      %1155 = vmatpush.bf16.msra.mxu0 %v1144
      %1156 = vmatmul.bf16.gmra.mxu0 %v996
      %v1157 = vpop.f32.mrf.mxu0
      %v1158 = vadd.f32 %v965, %v1157
      %v1159 = vpop.f32.mrf.mxu0
      %1160 = vdwg.mxu0
      %v1165 = vunpack.c.l.b16 %v915
      %v1166 = vunpack.c.l.b16 %v916
      %v1167 = vunpack.c.l.b16 %v917
      %v1168 = vunpack.c.l.b16 %v918
      %v1169 = vpack.c.b16 %v1166, %v1165
      %v1170 = vpack.c.b16 %v1168, %v1167
      %1173 = vmatpush.bf16.msra.mxu0 0
      %1174 = vmatpush.bf16.msra.mxu0 0
      %1175 = vmatpush.bf16.msra.mxu0 0
      %1176 = vmatpush.bf16.msra.mxu0 0
      %1177 = vmatpush.bf16.msra.mxu0 0
      %1178 = vmatpush.bf16.msra.mxu0 0
      %1179 = vmatpush.bf16.msra.mxu0 %v1170
      %1180 = vmatpush.bf16.msra.mxu0 %v1169
      %1181 = vmatmul.bf16.gmra.mxu0 %v996
      %v1182 = vpop.f32.mrf.mxu0
      %v1183 = vadd.f32 %v966, %v1182
      %v1184 = vpop.f32.mrf.mxu0
      %1185 = vdwg.mxu0
      %v1190 = vunpack.c.l.b16 %v919
      %v1191 = vunpack.c.l.b16 %v920
      %v1192 = vunpack.c.l.b16 %v921
      %v1193 = vunpack.c.l.b16 %v922
      %v1194 = vpack.c.b16 %v1191, %v1190
      %v1195 = vpack.c.b16 %v1193, %v1192
      %1198 = vmatpush.bf16.msra.mxu0 0
      %1199 = vmatpush.bf16.msra.mxu0 0
      %1200 = vmatpush.bf16.msra.mxu0 0
      %1201 = vmatpush.bf16.msra.mxu0 0
      %1202 = vmatpush.bf16.msra.mxu0 0
      %1203 = vmatpush.bf16.msra.mxu0 0
      %1204 = vmatpush.bf16.msra.mxu0 %v1195
      %1205 = vmatpush.bf16.msra.mxu0 %v1194
      %1206 = vmatmul.bf16.gmra.mxu0 %v996
      %v1207 = vpop.f32.mrf.mxu0
      %v1208 = vadd.f32 %v967, %v1207
      %v1209 = vpop.f32.mrf.mxu0
      %1210 = vdwg.mxu0
      %v1215 = vunpack.c.l.b16 %v923
      %v1216 = vunpack.c.l.b16 %v924
      %v1217 = vunpack.c.l.b16 %v925
      %v1218 = vunpack.c.l.b16 %v926
      %v1219 = vpack.c.b16 %v1216, %v1215
      %v1220 = vpack.c.b16 %v1218, %v1217
      %1223 = vmatpush.bf16.msra.mxu0 0
      %1224 = vmatpush.bf16.msra.mxu0 0
      %1225 = vmatpush.bf16.msra.mxu0 0
      %1226 = vmatpush.bf16.msra.mxu0 0
      %1227 = vmatpush.bf16.msra.mxu0 0
      %1228 = vmatpush.bf16.msra.mxu0 0
      %1229 = vmatpush.bf16.msra.mxu0 %v1220
      %1230 = vmatpush.bf16.msra.mxu0 %v1219
      %1231 = vmatmul.bf16.gmra.mxu0 %v996
      %v1232 = vpop.f32.mrf.mxu0
      %v1233 = vadd.f32 %v968, %v1232
      %v1234 = vpop.f32.mrf.mxu0
      %1235 = vdwg.mxu0
      %v1240 = vunpack.c.l.b16 %v927
      %v1241 = vunpack.c.l.b16 %v928
      %v1242 = vunpack.c.l.b16 %v929
      %v1243 = vunpack.c.l.b16 %v930
      %v1244 = vpack.c.b16 %v1241, %v1240
      %v1245 = vpack.c.b16 %v1243, %v1242
      %1248 = vmatpush.bf16.msra.mxu0 0
      %1249 = vmatpush.bf16.msra.mxu0 0
      %1250 = vmatpush.bf16.msra.mxu0 0
      %1251 = vmatpush.bf16.msra.mxu0 0
      %1252 = vmatpush.bf16.msra.mxu0 0
      %1253 = vmatpush.bf16.msra.mxu0 0
      %1254 = vmatpush.bf16.msra.mxu0 %v1245
      %1255 = vmatpush.bf16.msra.mxu0 %v1244
      %1256 = vmatmul.bf16.gmra.mxu0 %v996
      %v1257 = vpop.f32.mrf.mxu0
      %v1258 = vadd.f32 %v969, %v1257
      %v1259 = vpop.f32.mrf.mxu0
      %1260 = vdwg.mxu0
      %v1265 = vunpack.c.l.b16 %v931
      %v1266 = vunpack.c.l.b16 %v932
      %v1267 = vunpack.c.l.b16 %v933
      %v1268 = vunpack.c.l.b16 %v934
      %v1269 = vpack.c.b16 %v1266, %v1265
      %v1270 = vpack.c.b16 %v1268, %v1267
      %1273 = vmatpush.bf16.msra.mxu0 0
      %1274 = vmatpush.bf16.msra.mxu0 0
      %1275 = vmatpush.bf16.msra.mxu0 0
      %1276 = vmatpush.bf16.msra.mxu0 0
      %1277 = vmatpush.bf16.msra.mxu0 0
      %1278 = vmatpush.bf16.msra.mxu0 0
      %1279 = vmatpush.bf16.msra.mxu0 %v1270
      %1280 = vmatpush.bf16.msra.mxu0 %v1269
      %1281 = vmatmul.bf16.gmra.mxu0 %v996
      %v1282 = vpop.f32.mrf.mxu0
      %v1283 = vadd.f32 %v970, %v1282
      %v1284 = vpop.f32.mrf.mxu0
      %1285 = vdwg.mxu0
      %v1286 = vpack.c.bf16 %v1008, %v1008
      %v1287 = vpack.c.bf16 %v1033, %v1033
      %v1288 = vpack.c.bf16 %v1058, %v1058
      %v1289 = vpack.c.bf16 %v1083, %v1083
      %v1290 = vpack.c.bf16 %v1108, %v1108
      %v1291 = vpack.c.bf16 %v1133, %v1133
      %v1292 = vpack.c.bf16 %v1158, %v1158
      %v1293 = vpack.c.bf16 %v1183, %v1183
      %v1294 = vpack.c.bf16 %v1208, %v1208
      %v1295 = vpack.c.bf16 %v1233, %v1233
      %v1296 = vpack.c.bf16 %v1258, %v1258
      %v1297 = vpack.c.bf16 %v1283, %v1283
      %vm1298 = vcmask 64512
      %v1300 = vsel %vm1298, %v1286, 0
      %v1303 = vsel %vm1298, %v1290, 0
      %1305 = vmatpush.bf16.xpose.msra.mxu0 0
      %1306 = vmatpush.bf16.xpose.msra.mxu0 0
      %1307 = vmatpush.bf16.xpose.msra.mxu0 0
      %1308 = vmatpush.bf16.xpose.msra.mxu0 0
      %1309 = vmatpush.bf16.xpose.msra.mxu0 0
      %1310 = vmatpush.bf16.xpose.msra.mxu0 0
      %1311 = vmatpush.bf16.xpose.msra.mxu0 0
      %1312 = vmatpush.bf16.xpose.msra.mxu0 %v1303
      %1313 = vmatmul.bf16.gmra.mxu0 %v1300
      %v1314 = vpop.f32.mrf.mxu0
      %v1315 = vadd.f32 %v844, %v1314
      %v1316 = vpop.f32.mrf.mxu0
      %1317 = vdwg.mxu0
      %v1319 = vsel %vm1298, %v1287, 0
      %v1322 = vsel %vm1298, %v1291, 0
      %1324 = vmatpush.bf16.xpose.msra.mxu0 0
      %1325 = vmatpush.bf16.xpose.msra.mxu0 0
      %1326 = vmatpush.bf16.xpose.msra.mxu0 0
      %1327 = vmatpush.bf16.xpose.msra.mxu0 0
      %1328 = vmatpush.bf16.xpose.msra.mxu0 0
      %1329 = vmatpush.bf16.xpose.msra.mxu0 0
      %1330 = vmatpush.bf16.xpose.msra.mxu0 0
      %1331 = vmatpush.bf16.xpose.msra.mxu0 %v1322
      %1332 = vmatmul.bf16.gmra.mxu0 %v1319
      %v1333 = vpop.f32.mrf.mxu0
      %v1334 = vadd.f32 %v844, %v1333
      %v1335 = vpop.f32.mrf.mxu0
      %1336 = vdwg.mxu0
      %v1338 = vsel %vm1298, %v1288, 0
      %v1341 = vsel %vm1298, %v1292, 0
      %1343 = vmatpush.bf16.xpose.msra.mxu0 0
      %1344 = vmatpush.bf16.xpose.msra.mxu0 0
      %1345 = vmatpush.bf16.xpose.msra.mxu0 0
      %1346 = vmatpush.bf16.xpose.msra.mxu0 0
      %1347 = vmatpush.bf16.xpose.msra.mxu0 0
      %1348 = vmatpush.bf16.xpose.msra.mxu0 0
      %1349 = vmatpush.bf16.xpose.msra.mxu0 0
      %1350 = vmatpush.bf16.xpose.msra.mxu0 %v1341
      %1351 = vmatmul.bf16.gmra.mxu0 %v1338
      %v1352 = vpop.f32.mrf.mxu0
      %v1353 = vadd.f32 %v844, %v1352
      %v1354 = vpop.f32.mrf.mxu0
      %1355 = vdwg.mxu0
      %v1357 = vsel %vm1298, %v1289, 0
      %v1360 = vsel %vm1298, %v1293, 0
      %1362 = vmatpush.bf16.xpose.msra.mxu0 0
      %1363 = vmatpush.bf16.xpose.msra.mxu0 0
      %1364 = vmatpush.bf16.xpose.msra.mxu0 0
      %1365 = vmatpush.bf16.xpose.msra.mxu0 0
      %1366 = vmatpush.bf16.xpose.msra.mxu0 0
      %1367 = vmatpush.bf16.xpose.msra.mxu0 0
      %1368 = vmatpush.bf16.xpose.msra.mxu0 0
      %1369 = vmatpush.bf16.xpose.msra.mxu0 %v1360
      %1370 = vmatmul.bf16.gmra.mxu0 %v1357
      %v1371 = vpop.f32.mrf.mxu0
      %v1372 = vadd.f32 %v844, %v1371
      %v1373 = vpop.f32.mrf.mxu0
      %1374 = vdwg.mxu0
      %v1375 = vsel %vm1298, %v1315, -inf
      %1376 = vmax.xlane.f32.xlu0 %v1375
      %v1377 = vpop.xlane.xlu0 %1376
      %v1378 = vsel %vm1298, %v1334, -inf
      %1379 = vmax.xlane.f32.xlu0 %v1378
      %v1380 = vpop.xlane.xlu0 %1379
      %v1381 = vsel %vm1298, %v1353, -inf
      %1382 = vmax.xlane.f32.xlu0 %v1381
      %v1383 = vpop.xlane.xlu0 %1382
      %v1384 = vsel %vm1298, %v1372, -inf
      %1385 = vmax.xlane.f32.xlu0 %v1384
      %v1386 = vpop.xlane.xlu0 %1385
      %v1387 = vsub.f32 %v1315, %v1377
      %v1388 = vsub.f32 %v1334, %v1380
      %v1389 = vsub.f32 %v1353, %v1383
      %v1390 = vsub.f32 %v1372, %v1386
      %v1391 = vmul.f32 %v1387, 1.442695
      %v1392 = vpow.pop %v1391
      %v1393 = vmul.f32 %v1388, 1.442695
      %v1394 = vpow.pop %v1393
      %v1395 = vmul.f32 %v1389, 1.442695
      %v1396 = vpow.pop %v1395
      %v1397 = vmul.f32 %v1390, 1.442695
      %v1398 = vpow.pop %v1397
      %v1399 = vsel %vm1298, %v1392, 0.0
      %1400 = vadd.xlane.f32.xlu0 %v1399
      %v1401 = vpop.xlane.xlu0 %1400
      %v1402 = vsel %vm1298, %v1394, 0.0
      %1403 = vadd.xlane.f32.xlu0 %v1402
      %v1404 = vpop.xlane.xlu0 %1403
      %v1405 = vsel %vm1298, %v1396, 0.0
      %1406 = vadd.xlane.f32.xlu0 %v1405
      %v1407 = vpop.xlane.xlu0 %1406
      %v1408 = vsel %vm1298, %v1398, 0.0
      %1409 = vadd.xlane.f32.xlu0 %v1408
      %v1410 = vpop.xlane.xlu0 %1409
      %v1411 = vrcp.pop %v1401
      %v1412 = vrcp.pop %v1404
      %v1413 = vrcp.pop %v1407
      %v1414 = vrcp.pop %v1410
      %v1415 = vmul.f32 %v1392, %v1411
      %v1416 = vmul.f32 %v1394, %v1412
      %v1417 = vmul.f32 %v1396, %v1413
      %v1418 = vmul.f32 %v1398, %v1414
      %v1419 = vpack.c.bf16 %v1415, %v1415
      %v1420 = vpack.c.bf16 %v1416, %v1416
      %v1421 = vpack.c.bf16 %v1417, %v1417
      %v1422 = vpack.c.bf16 %v1418, %v1418
      %v1424 = vsel %vm1298, %v1419, 0
      %vm1426 = vcmask 1043456
      %v1428 = vsel %vm1426, %v1294, 0
      %1430 = vmatpush.bf16.msra.mxu0 0
      %1431 = vmatpush.bf16.msra.mxu0 0
      %1432 = vmatpush.bf16.msra.mxu0 0
      %1433 = vmatpush.bf16.msra.mxu0 0
      %1434 = vmatpush.bf16.msra.mxu0 0
      %1435 = vmatpush.bf16.msra.mxu0 0
      %1436 = vmatpush.bf16.msra.mxu0 0
      %1437 = vmatpush.bf16.msra.mxu0 %v1428
      %1438 = vmatmul.bf16.gmra.mxu0 %v1424
      %v1439 = vpop.f32.mrf.mxu0
      %v1440 = vadd.f32 0.0, %v1439
      %v1441 = vpop.f32.mrf.mxu0
      %1442 = vdwg.mxu0
      %v1444 = vsel %vm1298, %v1420, 0
      %v1447 = vsel %vm1426, %v1295, 0
      %1449 = vmatpush.bf16.msra.mxu0 0
      %1450 = vmatpush.bf16.msra.mxu0 0
      %1451 = vmatpush.bf16.msra.mxu0 0
      %1452 = vmatpush.bf16.msra.mxu0 0
      %1453 = vmatpush.bf16.msra.mxu0 0
      %1454 = vmatpush.bf16.msra.mxu0 0
      %1455 = vmatpush.bf16.msra.mxu0 0
      %1456 = vmatpush.bf16.msra.mxu0 %v1447
      %1457 = vmatmul.bf16.gmra.mxu0 %v1444
      %v1458 = vpop.f32.mrf.mxu0
      %v1459 = vadd.f32 0.0, %v1458
      %v1460 = vpop.f32.mrf.mxu0
      %1461 = vdwg.mxu0
      %v1463 = vsel %vm1298, %v1421, 0
      %v1466 = vsel %vm1426, %v1296, 0
      %1468 = vmatpush.bf16.msra.mxu0 0
      %1469 = vmatpush.bf16.msra.mxu0 0
      %1470 = vmatpush.bf16.msra.mxu0 0
      %1471 = vmatpush.bf16.msra.mxu0 0
      %1472 = vmatpush.bf16.msra.mxu0 0
      %1473 = vmatpush.bf16.msra.mxu0 0
      %1474 = vmatpush.bf16.msra.mxu0 0
      %1475 = vmatpush.bf16.msra.mxu0 %v1466
      %1476 = vmatmul.bf16.gmra.mxu0 %v1463
      %v1477 = vpop.f32.mrf.mxu0
      %v1478 = vadd.f32 0.0, %v1477
      %v1479 = vpop.f32.mrf.mxu0
      %1480 = vdwg.mxu0
      %v1482 = vsel %vm1298, %v1422, 0
      %v1485 = vsel %vm1426, %v1297, 0
      %1487 = vmatpush.bf16.msra.mxu0 0
      %1488 = vmatpush.bf16.msra.mxu0 0
      %1489 = vmatpush.bf16.msra.mxu0 0
      %1490 = vmatpush.bf16.msra.mxu0 0
      %1491 = vmatpush.bf16.msra.mxu0 0
      %1492 = vmatpush.bf16.msra.mxu0 0
      %1493 = vmatpush.bf16.msra.mxu0 0
      %1494 = vmatpush.bf16.msra.mxu0 %v1485
      %1495 = vmatmul.bf16.gmra.mxu0 %v1482
      %v1496 = vpop.f32.mrf.mxu0
      %v1497 = vadd.f32 0.0, %v1496
      %v1498 = vpop.f32.mrf.mxu0
      %1499 = vdwg.mxu0
      %v1500 = vpack.c.bf16 %v1440, %v1440
      %v1501 = vpack.c.bf16 %v1459, %v1459
      %v1502 = vpack.c.bf16 %v1478, %v1478
      %v1503 = vpack.c.bf16 %v1497, %v1497
      %v1504 = vld [vmem:[%s805] sm:$0xf]
      %v1505 = vld [vmem:[%s805 + $0x4] sm:$0xf]
      %v1506 = vld [vmem:[%s805 + $0x8] sm:$0xf]
      %v1507 = vld [vmem:[%s805 + $0xc] sm:$0xf]
      %v1509 = vsel %vm1298, %v1500, 0
      %v1512 = vsel %vm1426, %v1504, 0
      %1514 = vmatpush.bf16.msra.mxu0 0
      %1515 = vmatpush.bf16.msra.mxu0 0
      %1516 = vmatpush.bf16.msra.mxu0 0
      %1517 = vmatpush.bf16.msra.mxu0 0
      %1518 = vmatpush.bf16.msra.mxu0 0
      %1519 = vmatpush.bf16.msra.mxu0 0
      %1520 = vmatpush.bf16.msra.mxu0 0
      %1521 = vmatpush.bf16.msra.mxu0 %v1512
      %1522 = vmatmul.bf16.gmra.mxu0 %v1509
      %v1523 = vpop.f32.mrf.mxu0
      %v1524 = vadd.f32 0.0, %v1523
      %v1525 = vpop.f32.mrf.mxu0
      %1526 = vdwg.mxu0
      %v1528 = vsel %vm1298, %v1501, 0
      %v1531 = vsel %vm1426, %v1505, 0
      %1533 = vmatpush.bf16.msra.mxu0 0
      %1534 = vmatpush.bf16.msra.mxu0 0
      %1535 = vmatpush.bf16.msra.mxu0 0
      %1536 = vmatpush.bf16.msra.mxu0 0
      %1537 = vmatpush.bf16.msra.mxu0 0
      %1538 = vmatpush.bf16.msra.mxu0 0
      %1539 = vmatpush.bf16.msra.mxu0 0
      %1540 = vmatpush.bf16.msra.mxu0 %v1531
      %1541 = vmatmul.bf16.gmra.mxu0 %v1528
      %v1542 = vpop.f32.mrf.mxu0
      %v1543 = vadd.f32 0.0, %v1542
      %v1544 = vpop.f32.mrf.mxu0
      %1545 = vdwg.mxu0
      %v1547 = vsel %vm1298, %v1502, 0
      %v1550 = vsel %vm1426, %v1506, 0
      %1552 = vmatpush.bf16.msra.mxu0 0
      %1553 = vmatpush.bf16.msra.mxu0 0
      %1554 = vmatpush.bf16.msra.mxu0 0
      %1555 = vmatpush.bf16.msra.mxu0 0
      %1556 = vmatpush.bf16.msra.mxu0 0
      %1557 = vmatpush.bf16.msra.mxu0 0
      %1558 = vmatpush.bf16.msra.mxu0 0
      %1559 = vmatpush.bf16.msra.mxu0 %v1550
      %1560 = vmatmul.bf16.gmra.mxu0 %v1547
      %v1561 = vpop.f32.mrf.mxu0
      %v1562 = vadd.f32 0.0, %v1561
      %v1563 = vpop.f32.mrf.mxu0
      %1564 = vdwg.mxu0
      %v1566 = vsel %vm1298, %v1503, 0
      %v1569 = vsel %vm1426, %v1507, 0
      %1571 = vmatpush.bf16.msra.mxu0 0
      %1572 = vmatpush.bf16.msra.mxu0 0
      %1573 = vmatpush.bf16.msra.mxu0 0
      %1574 = vmatpush.bf16.msra.mxu0 0
      %1575 = vmatpush.bf16.msra.mxu0 0
      %1576 = vmatpush.bf16.msra.mxu0 0
      %1577 = vmatpush.bf16.msra.mxu0 0
      %1578 = vmatpush.bf16.msra.mxu0 %v1569
      %1579 = vmatmul.bf16.gmra.mxu0 %v1566
      %v1580 = vpop.f32.mrf.mxu0
      %v1581 = vadd.f32 0.0, %v1580
      %v1582 = vpop.f32.mrf.mxu0
      %1583 = vdwg.mxu0
      %v1584 = vsel %vm848, %v1524, 0.0
      %v1585 = vsel %vm848, %v1543, 0.0
      %v1586 = vadd.f32 %v1584, %v1585
      %v1587 = vsel %vm848, %v1562, 0.0
      %v1588 = vadd.f32 %v1586, %v1587
      %v1589 = vsel %vm848, %v1581, 0.0
      %v1590 = vadd.f32 %v1588, %v1589
      %v1591 = vld [vmem:[%s808] sm:$0x1]
      %v1593 = vperm.slane %v1591, 0
      %v1595 = vadd.f32 %v1590, %v1593
      %1597 = vset.pattern.permute.xlu0 0
      %1598 = vperm.xlu0 %1597, %v845
      %v1599 = vpop.permute.xlu0 %1598
      %v1601 = vmul.f32 %v1599, %v1595
      %v1602 = vadd.f32 %v843, %v1601
      %v1603 = vld [vmem:[%s811] sm:$0x1]
      %v1604 = vld [vmem:[%s814] sm:$0x1]
      %v1605 = vsel %vm848, %v1602, 0.0
      %1606 = vadd.xlane.f32.xlu0 %v1605
      %v1607 = vpop.xlane.xlu0 %1606
      %v1608 = vmul.f32 %v1607, %v858
      %v1609 = vsub.f32 %v1602, %v1608
      %v1610 = vmul.f32 %v1609, %v1609
      %v1611 = vsel %vm848, %v1610, 0.0
      %1612 = vadd.xlane.f32.xlu0 %v1611
      %v1613 = vpop.xlane.xlu0 %1612
      %v1614 = vmul.f32 %v1613, %v858
      %v1615 = vadd.f32 %v1614, 1e-05
      %v1616 = vrsqrt.pop %v1615
      %v1617 = vmul.f32 %v1616, %v1615
      %v1618 = vmul.f32 %v1617, %v1616
      %v1619 = vmul.f32 0.5, %v1618
      %v1620 = vsub.f32 1.5, %v1619
      %v1621 = vmul.f32 %v1616, %v1620
      %vm1622 = vweird.f32 %v1615
      %vm1623 = vweird.f32 %v1616
      %vm1624 = vmor %vm1622, %vm1623
      %v1625 = vsel %vm1624, %v1616, %v1621
      %v1626 = vmul.f32 %v1609, %v1625
      %v1628 = vperm.slane %v1603, 0
      %v1630 = vmul.f32 %v1626, %v1628
      %v1632 = vperm.slane %v1604, 0
      %v1634 = vadd.f32 %v1630, %v1632
      %v1635 = vpack.c.bf16 %v1634, %v1634
      %v1636 = vld [vmem:[%s819] sm:$0xf]
      %v1637 = vld [vmem:[%s819 + $0x4] sm:$0xf]
      %v1638 = vld [vmem:[%s819 + $0x8] sm:$0xf]
      %v1639 = vld [vmem:[%s819 + $0xc] sm:$0xf]
      %v1640 = vld [vmem:[%s822] sm:$0x1]
      %v1642 = vperm.slane %v1640, 0
      %v1648 = vunpack.c.l.b16 %v1636
      %v1649 = vunpack.c.l.b16 %v1637
      %v1650 = vunpack.c.l.b16 %v1638
      %v1651 = vunpack.c.l.b16 %v1639
      %v1652 = vpack.c.b16 %v1649, %v1648
      %v1653 = vpack.c.b16 %v1651, %v1650
      %v1657 = vsel %vm848, %v1635, 0
      %1659 = vmatpush.bf16.msra.mxu0 0
      %1660 = vmatpush.bf16.msra.mxu0 0
      %1661 = vmatpush.bf16.msra.mxu0 0
      %1662 = vmatpush.bf16.msra.mxu0 0
      %1663 = vmatpush.bf16.msra.mxu0 0
      %1664 = vmatpush.bf16.msra.mxu0 0
      %1665 = vmatpush.bf16.msra.mxu0 %v1653
      %1666 = vmatpush.bf16.msra.mxu0 %v1652
      %1667 = vmatmul.bf16.gmra.mxu0 %v1657
      %v1668 = vpop.f32.mrf.mxu0
      %v1669 = vadd.f32 %v1642, %v1668
      %v1670 = vpop.f32.mrf.mxu0
      %1671 = vdwg.mxu0
      %v1672 = vmul.f32 %v1669, 0.5
      %v1673 = vmul.f32 %v1669, 0.70710677
      %v1674 = vmul.f32 %v1673, %v1673
      %v1675 = vmin.f32 16.0, %v1674
      %v1676 = vmul.f32 %v1675, 2.1237322e-06
      %v1677 = vadd.f32 %v1676, 0.00028619796
      %v1678 = vmul.f32 %v1675, %v1677
      %v1679 = vadd.f32 %v1678, 0.0036580483
      %v1680 = vmul.f32 %v1675, %v1679
      %v1681 = vadd.f32 %v1680, 0.05243302
      %v1682 = vmul.f32 %v1675, %v1681
      %v1683 = vadd.f32 %v1682, 0.18741608
      %v1684 = vmul.f32 %v1675, %v1683
      %v1685 = vadd.f32 %v1684, 1.1283791
      %v1686 = vmul.f32 %v1673, %v1685
      %v1687 = vmul.f32 %v1675, 3.8918573e-05
      %v1688 = vadd.f32 %v1687, 0.001143296
      %v1689 = vmul.f32 %v1675, %v1688
      %v1690 = vadd.f32 %v1689, 0.014752088
      %v1691 = vmul.f32 %v1675, %v1690
      %v1692 = vadd.f32 %v1691, 0.112945676
      %v1693 = vmul.f32 %v1675, %v1692
      %v1694 = vadd.f32 %v1693, 0.4994258
      %v1695 = vmul.f32 %v1675, %v1694
      %v1696 = vadd.f32 %v1695, 1.0
      %v1697 = vrcp.pop %v1696
      %v1698 = vmul.f32 %v1696, %v1697
      %v1699 = vsub.f32 1.0, %v1698
      %v1700 = vmul.f32 %v1697, %v1699
      %v1701 = vadd.f32 %v1697, %v1700
      %vm1702 = vweird.f32 %v1696
      %vm1703 = vweird.f32 %v1697
      %vm1704 = vmor %vm1702, %vm1703
      %v1705 = vsel %vm1704, %v1697, %v1701
      %v1706 = vand.u32 2147483647, %v1696
      %vm1707 = vcmp.eq.f32.partialorder %v1706, 8.507059e+37
      %v1708 = vand.u32 %v1696, 2147483648
      %v1709 = vor.u32 1.1754944e-38, %v1708
      %v1710 = vsel %vm1707, %v1709, %v1705
      %v1711 = vmul.f32 %v1686, %v1710
      %v1712 = vmin.f32 %v1711, 1.0
      %v1713 = vmax.f32 %v1712, -1.0
      %v1714 = vadd.f32 %v1713, 1.0
      %v1715 = vmul.f32 %v1672, %v1714
      %v1716 = vpack.c.bf16 %v1715, %v1715
      %v1717 = vld [vmem:[%s827] sm:$0xf]
      %v1718 = vld [vmem:[%s827 + $0x4] sm:$0xf]
      %v1719 = vld [vmem:[%s827 + $0x8] sm:$0xf]
      %v1720 = vld [vmem:[%s827 + $0xc] sm:$0xf]
      %v1721 = vld [vmem:[%s827 + $0x10] sm:$0xf]
      %v1722 = vld [vmem:[%s827 + $0x14] sm:$0xf]
      %v1723 = vld [vmem:[%s827 + $0x18] sm:$0xf]
      %v1724 = vld [vmem:[%s827 + $0x1c] sm:$0xf]
      %v1725 = vld [vmem:[%s827 + $0x20] sm:$0xf]
      %v1726 = vld [vmem:[%s827 + $0x24] sm:$0xf]
      %v1727 = vld [vmem:[%s827 + $0x28] sm:$0xf]
      %v1728 = vld [vmem:[%s827 + $0x2c] sm:$0xf]
      %v1729 = vld [vmem:[%s827 + $0x30] sm:$0xf]
      %v1730 = vld [vmem:[%s827 + $0x34] sm:$0xf]
      %v1731 = vld [vmem:[%s827 + $0x38] sm:$0xf]
      %v1732 = vld [vmem:[%s827 + $0x3c] sm:$0xf]
      %v1733 = vld [vmem:[%s830] sm:$0x1]
      %v1735 = vperm.slane %v1733, 0
      %v1753 = vunpack.c.l.b16 %v1717
      %v1754 = vunpack.c.l.b16 %v1718
      %v1755 = vunpack.c.l.b16 %v1719
      %v1756 = vunpack.c.l.b16 %v1720
      %v1757 = vunpack.c.l.b16 %v1721
      %v1758 = vunpack.c.l.b16 %v1722
      %v1759 = vunpack.c.l.b16 %v1723
      %v1760 = vunpack.c.l.b16 %v1724
      %v1761 = vunpack.c.l.b16 %v1725
      %v1762 = vunpack.c.l.b16 %v1726
      %v1763 = vunpack.c.l.b16 %v1727
      %v1764 = vunpack.c.l.b16 %v1728
      %v1765 = vunpack.c.l.b16 %v1729
      %v1766 = vunpack.c.l.b16 %v1730
      %v1767 = vunpack.c.l.b16 %v1731
      %v1768 = vunpack.c.l.b16 %v1732
      %v1769 = vpack.c.b16 %v1754, %v1753
      %v1770 = vpack.c.b16 %v1756, %v1755
      %v1771 = vpack.c.b16 %v1758, %v1757
      %v1772 = vpack.c.b16 %v1760, %v1759
      %v1773 = vpack.c.b16 %v1762, %v1761
      %v1774 = vpack.c.b16 %v1764, %v1763
      %v1775 = vpack.c.b16 %v1766, %v1765
      %v1776 = vpack.c.b16 %v1768, %v1767
      %1785 = vmatpush.bf16.msra.mxu0 %v1776
      %1786 = vmatpush.bf16.msra.mxu0 %v1775
      %1787 = vmatpush.bf16.msra.mxu0 %v1774
      %1788 = vmatpush.bf16.msra.mxu0 %v1773
      %1789 = vmatpush.bf16.msra.mxu0 %v1772
      %1790 = vmatpush.bf16.msra.mxu0 %v1771
      %1791 = vmatpush.bf16.msra.mxu0 %v1770
      %1792 = vmatpush.bf16.msra.mxu0 %v1769
      %1793 = vmatmul.bf16.gmra.mxu0 %v1716
      %v1794 = vpop.f32.mrf.mxu0
      %v1795 = vadd.f32 %v1735, %v1794
      %v1796 = vpop.f32.mrf.mxu0
      %1797 = vdwg.mxu0
      %v1798 = vmul.f32 %v1599, %v1795
      %v1799 = vadd.f32 %v1602, %v1798
      %1800 = vst.msk [vmem:[#allocation2] sm:$0xff] %vm848, %v1799
      %p1801 = scmp.eq.s32.totalorder %s43, 13
      // Predicated region
      $region97: #{nes_forward.1} parent=91 // pred_check
        %p1802 = pneg %p1801
      $region98: #{nes_forward.1} parent=91 // pred_check_branch
        %1804 = sbr.rel (%p1802) target = $region100
      $region99: #{nes_forward.1} parent=91 // pred_region
        %v1805 = vld [vmem:[%s4] sm:$0x3]
        %v1807 = vsel %vm1298, %v1805, 0
        %1809 = vmatpush.msra.mxu0 0.0
        %1810 = vmatpush.msra.mxu0 0.0
        %1811 = vmatpush.msra.mxu0 0.0
        %1812 = vmatpush.msra.mxu0 0.0
        %1813 = vmatpush.msra.mxu0 0.0
        %1814 = vmatpush.msra.mxu0 0.0
        %1815 = vmatpush.msra.mxu0 0.0
        %1816 = vmatpush.msra.mxu0 0.0
        %1817 = vmatpush.msra.mxu0 0.0
        %1818 = vmatpush.msra.mxu0 0.0
        %1819 = vmatpush.msra.mxu0 0.0
        %1820 = vmatpush.msra.mxu0 0.0
        %1821 = vmatpush.msra.mxu0 0.0
        %1822 = vmatpush.msra.mxu0 0.0
        %1823 = vmatpush.msra.mxu0 0.0
        %1824 = vmatpush.msra.mxu0 %v1799
        %1825 = vmatmul.f32.gmra.mxu0 %v1807
        %v1826 = vpop.f32.mrf.mxu0
        %v1827 = vadd.f32 0.0, %v1826
        %1828 = vdwg.mxu0
        %v1829 = vpack.c.bf16 %v1827, %v1827
        %v1830 = vld [vmem:[%s17] sm:$0xf]
        %v1831 = vld [vmem:[%s17 + $0x4] sm:$0xf]
        %v1832 = vld [vmem:[%s17 + $0x8] sm:$0xf]
        %v1833 = vld [vmem:[%s17 + $0xc] sm:$0xf]
        %v1834 = vld [vmem:[%s18] sm:$0x1]
        %v1836 = vperm.slane %v1834, 0
        %v1842 = vunpack.c.l.b16 %v1830
        %v1843 = vunpack.c.l.b16 %v1831
        %v1844 = vunpack.c.l.b16 %v1832
        %v1845 = vunpack.c.l.b16 %v1833
        %v1846 = vpack.c.b16 %v1843, %v1842
        %v1847 = vpack.c.b16 %v1845, %v1844
        %v1851 = vsel %vm848, %v1829, 0
        %1853 = vmatpush.bf16.msra.mxu0 0
        %1854 = vmatpush.bf16.msra.mxu0 0
        %1855 = vmatpush.bf16.msra.mxu0 0
        %1856 = vmatpush.bf16.msra.mxu0 0
        %1857 = vmatpush.bf16.msra.mxu0 0
        %1858 = vmatpush.bf16.msra.mxu0 0
        %1859 = vmatpush.bf16.msra.mxu0 %v1847
        %1860 = vmatpush.bf16.msra.mxu0 %v1846
        %1861 = vmatmul.bf16.gmra.mxu0 %v1851
        %v1862 = vpop.f32.mrf.mxu0
        %v1863 = vadd.f32 %v1836, %v1862
        %v1864 = vpop.f32.mrf.mxu0
        %1865 = vdwg.mxu0
        %1867 = vrot.lane.b32.xlu0 %v1863, 32
        %v1868 = vpop.permute.xlu0 %1867
        %v1870 = vsel %vm848, %v1827, %v1868
        %vm1871 = vcmask 517120
        %1872 = vst.msk [vmem:[%s834] sm:$0x3] %vm1871, %v1870
      $region100: #{nes_forward.1} parent=91 // pred_fallthru
        _
      %p1873 = scmp.lt.s32.totalorder %s42, 1
      %s1874 = scalar_select %p1873, %s42, 1
      %s1875 = smul.addr %s1874, 2
      %s1876 = scalar_lea.vmem %s19, %s1875
      // Predicated region
      $region101: #{nes_forward.1} parent=91 // pred_check
        %p1877 = pneg %p525
      $region102: #{nes_forward.1} parent=91 // pred_check_branch
        %1879 = sbr.rel (%p1877) target = $region104
      $region103: #{nes_forward.1} parent=91 // pred_region
        _
      $region104: #{nes_forward.1} parent=91 // pred_fallthru
        _
    $region92: #{nes_forward.1} parent=5 // pred_fallthru
      _
    %p1880 = scmp.le.s32.totalorder 2, %s33
    // Predicated region
    $region105: #{nes_forward.1} parent=5 // pred_check
      %p1881 = pneg %p1880
    $region106: #{nes_forward.1} parent=5 // pred_check_branch
      %1883 = sbr.rel (%p1881) target = $region108
    $region107: #{nes_forward.1} parent=5 // pred_region
      %s1884 = ssub.s32 %s33, 2
      // Predicated region
      $region109: #{nes_forward.1} parent=107 // pred_check
        %p1885 = pneg %p531
      $region110: #{nes_forward.1} parent=107 // pred_check_branch
        %1887 = sbr.rel (%p1885) target = $region112
      $region111: #{nes_forward.1} parent=107 // pred_region
        %p1888 = scmp.lt.s32.totalorder %s44, 1
        %s1889 = scalar_select %p1888, %s44, 1
        %s1890 = smul.addr %s1889, 2
        %s1891 = scalar_lea.vmem %s19, %s1890
      $region112: #{nes_forward.1} parent=107 // pred_fallthru
        _
    $region108: #{nes_forward.1} parent=5 // pred_fallthru
      _
  $region6: #{nes_forward.1} parent=0 // loop_footer
    %s37 = sadd.s32 1, %s33
  $region7: #{nes_forward.1} parent=0 // loop_footer_branch
    %32 = sbr.rel target = $region3
  $region8: #{nes_forward.1} parent=0 // loop_exit
    _

</llo_original>
